<compile_context>
chip_gen: v7x
topology: tpu7x:2x2x1
jax: 0.10.0
libtpu: 0.0.40
codegen_flags: <defaults>
</compile_context>

<pallas_src>
import jax
import jax.numpy as jnp
from jax import lax
from jax.experimental import pallas as pl
from jax.experimental.pallas import tpu as pltpu


def _rnn_chunk_kernel(ci_ref, h0_ref, w_ci_ref, w_h_ref, b_f_ref,
                      w_o2o_ref, b_o2o_ref, slab_ref, h_carry, fused_scr):
    """One grid step == Tc timesteps of the recurrence for one batch chunk.

    Per grid step:
      1. batched hidden-independent projection  pre = ci @ w_ci + b_fused
      2. serial recurrence  fused_t = pre_t + h_t @ w_h ; h_{t+1} = fused_t[:, :hid]
         (h carried as a fori_loop carry value)
      3. batched post-pass  out2 = fused @ w_o2o + b_o2o ; log-softmax
      4. one lane-dense (128-padded) slab store for the whole chunk
    """
    tc_idx = pl.program_id(1)
    Tc, Bc, ci_sz = ci_ref.shape
    hid = h_carry.shape[1]
    fused_sz = w_ci_ref.shape[1]
    out_sz = b_o2o_ref.shape[1]
    slab_w = slab_ref.shape[2]
    rows = Tc * Bc

    # (Re)load the initial hidden state at the start of each sequence chunk run.
    @pl.when(tc_idx == 0)
    def _():
        h_carry[...] = h0_ref[...]

    # --- 1. hidden-independent input projection, batched over the chunk -----
    ci_flat = ci_ref[...].reshape(rows, ci_sz)
    pre = (jnp.dot(ci_flat, w_ci_ref[...], preferred_element_type=jnp.float32)
           + b_f_ref[...])
    fused_scr[...] = pre.reshape(Tc, Bc, fused_sz)

    # --- 2. serial recurrence: only h @ w_h is on the critical path ---------
    w_h = w_h_ref[...]          # hoisted load: weights read once per chunk

    def step(t, h):
        fused = fused_scr[t] + jnp.dot(h, w_h, preferred_element_type=jnp.float32)
        fused_scr[t] = fused          # [hidden_new_t | out1_t] for the post-pass
        return fused[:, :hid]         # hidden carried as a loop value

    h_final = lax.fori_loop(0, Tc, step, h_carry[...], unroll=True)
    h_carry[...] = h_final            # persist across time-chunk grid steps

    # --- 3. batched o2o + log-softmax, off the recurrence path --------------
    fused_all = fused_scr[...].reshape(rows, fused_sz)
    out2 = (jnp.dot(fused_all, w_o2o_ref[...], preferred_element_type=jnp.float32)
            + b_o2o_ref[...])
    # Dropout(p=0.1): identity (eval-mode semantics).
    # TODO(synk): training-mode stochastic dropout (pltpu.prng_*) not implemented.
    m = jnp.max(out2, axis=1, keepdims=True)
    logp = out2 - (m + jnp.log(jnp.sum(jnp.exp(out2 - m), axis=1, keepdims=True)))

    # --- 4. single lane-dense slab store for the whole chunk ----------------
    pieces = [logp, fused_all[:, :hid]]
    pad = slab_w - out_sz - hid
    if pad > 0:
        pieces.append(jnp.zeros((rows, pad), jnp.float32))
    slab_ref[...] = jnp.concatenate(pieces, axis=-1).reshape(Tc, Bc, slab_w)


def rnn_forward_seq(category_seq, input_seq, hidden0, params, *,
                    time_block=None, batch_block=None):
    """Run the full recurrence inside one pallas_call.

    category_seq: (T, B, n_categories), input_seq: (T, B, input_size),
    hidden0: (B, hidden_size).
    Returns (log_probs (T, B, output_size), hidden_states (T, B, hidden_size)).
    """
    T, B, n_cat = category_seq.shape
    in_sz = input_seq.shape[2]
    hid = hidden0.shape[1]
    out_sz = params["b_o2o"].shape[1]
    ci_sz = n_cat + in_sz
    fused_sz = hid + out_sz
    slab_w = pl.cdiv(out_sz + hid, 128) * 128   # lane-dense (>=128) output slab

    # Pad batch to a multiple of 8 (f32 sublane count): fills vreg sublanes and
    # MXU M-rows for free; padded rows sliced off at the end.
    B_pad = pl.cdiv(B, 8) * 8
    if B_pad != B:
        extra = B_pad - B
        category_seq = jnp.pad(category_seq, ((0, 0), (0, extra), (0, 0)))
        input_seq = jnp.pad(input_seq, ((0, 0), (0, extra), (0, 0)))
        hidden0 = jnp.pad(hidden0, ((0, extra), (0, 0)))

    Tc = T if time_block is None else min(time_block, T)
    assert T % Tc == 0, "time_block must divide T"
    Bc = B_pad if batch_block is None else min(batch_block, B_pad)
    assert B_pad % Bc == 0 and Bc % 8 == 0, "batch_block must be a multiple of 8"

    # [category | input] per step is hidden-independent -> concat once here.
    ci_seq = jnp.concatenate([category_seq, input_seq], axis=2)

    # Fuse i2h|i2o column-wise; split rows at the hidden boundary so the kernel
    # needs only one batched input matmul + one per-step h matmul.
    w_fused = jnp.concatenate([params["w_i2h"], params["w_i2o"]], axis=1)
    w_ci = w_fused[:ci_sz]          # (ci_sz, hid + out)
    w_h = w_fused[ci_sz:]           # (hid,   hid + out)
    b_fused = jnp.concatenate([params["b_i2h"], params["b_i2o"]], axis=1)

    grid = (B_pad // Bc, T // Tc)   # (parallel batch chunks, sequential time chunks)

    slab = pl.pallas_call(
        _rnn_chunk_kernel,
        out_shape=jax.ShapeDtypeStruct((T, B_pad, slab_w), jnp.float32),
        grid=grid,
        in_specs=[
            pl.BlockSpec((Tc, Bc, ci_sz), lambda b, t: (t, b, 0)),   # chunk input
            pl.BlockSpec((Bc, hid), lambda b, t: (b, 0)),            # h0 (read @ t==0)
            pl.BlockSpec((ci_sz, fused_sz), lambda b, t: (0, 0)),    # weights stay
            pl.BlockSpec((hid, fused_sz), lambda b, t: (0, 0)),      #   resident in
            pl.BlockSpec((1, fused_sz), lambda b, t: (0, 0)),        #   VMEM for the
            pl.BlockSpec((fused_sz, out_sz), lambda b, t: (0, 0)),   #   whole sequence
            pl.BlockSpec((1, out_sz), lambda b, t: (0, 0)),
        ],
        out_specs=pl.BlockSpec((Tc, Bc, slab_w), lambda b, t: (t, b, 0)),
        scratch_shapes=[
            pltpu.VMEM((Bc, hid), jnp.float32),           # hidden carry across chunks
            pltpu.VMEM((Tc, Bc, fused_sz), jnp.float32),  # pre / fused slabs for chunk
        ],
        compiler_params=pltpu.CompilerParams(
            # batch chunks independent (v7x megacore); time recurrence sequential.
            dimension_semantics=("parallel", "arbitrary"),
            vmem_limit_bytes=32 * 1024 * 1024,  # explicit (v5e scoped default is 16 MiB)
        ),
    )(ci_seq, hidden0, w_ci, w_h, b_fused, params["w_o2o"], params["b_o2o"])

    outputs = slab[:, :B, :out_sz]
    hiddens = slab[:, :B, out_sz:out_sz + hid]
    return outputs, hiddens


def rnn_forward(category, inp, hidden, params):
    """Exact equivalent of RNN.forward(category, input, hidden): one step."""
    outs, hids = rnn_forward_seq(category[None], inp[None], hidden, params)
    return outs[0], hids[0]


def init_params(key, n_categories, input_size, hidden_size, output_size):
    """Deterministic init matching PyTorch Linear shapes (stored transposed)."""
    combined = n_categories + input_size + hidden_size
    o2o_in = hidden_size + output_size
    ks = jax.random.split(key, 6)

    def uni(k, shape, fan_in):
        bound = 1.0 / jnp.sqrt(fan_in)
        return jax.random.uniform(k, shape, jnp.float32, -bound, bound)

    w_i2h = uni(ks[0], (combined, hidden_size), combined)
    b_i2h = uni(ks[1], (1, hidden_size), combined)
    w_i2o = uni(ks[2], (combined, output_size), combined)
    b_i2o = uni(ks[3], (1, output_size), combined)
    w_o2o = uni(ks[4], (o2o_in, output_size), o2o_in)
    b_o2o = uni(ks[5], (1, output_size), o2o_in)

    return dict(w_i2h=w_i2h, b_i2h=b_i2h, w_i2o=w_i2o, b_i2o=b_i2o,
                w_o2o=w_o2o, b_o2o=b_o2o)


# ----------------------------- pure-JAX reference -----------------------------
def rnn_step_ref(category, inp, hidden, params):
    ic = jnp.concatenate([category, inp, hidden], axis=1)
    h = ic @ params["w_i2h"] + params["b_i2h"]
    o = ic @ params["w_i2o"] + params["b_i2o"]
    oc = jnp.concatenate([h, o], axis=1)
    o2 = oc @ params["w_o2o"] + params["b_o2o"]
    o2 = o2 - jax.nn.logsumexp(o2, axis=1, keepdims=True)
    return o2, h


def rnn_seq_ref(category_seq, input_seq, hidden0, params):
    def step(h, cx):
        c, x = cx
        o, h_new = rnn_step_ref(c, x, h, params)
        return h_new, (o, h_new)
    _, (outs, hids) = jax.lax.scan(step, hidden0, (category_seq, input_seq))
    return outs, hids


if __name__ == "__main__":
    T, B = 8, 8   # batch 8 fills f32 sublanes / MXU M-rows (perf review item 7)
    n_categories, input_size, hidden_size, output_size = 8, 16, 32, 16

    key = jax.random.PRNGKey(0)
    k_cat, k_inp, k_par = jax.random.split(key, 3)

    category_seq = jax.random.normal(k_cat, (T, B, n_categories), jnp.float32)
    input_seq = jax.random.normal(k_inp, (T, B, input_size), jnp.float32)
    hidden0 = jnp.zeros((B, hidden_size), jnp.float32)  # init_hidden()

    params = init_params(k_par, n_categories, input_size, hidden_size, output_size)
    outs_ref, hids_ref = rnn_seq_ref(category_seq, input_seq, hidden0, params)

    # Full-sequence kernel: whole recurrence in one grid step (Tc = T).
    outs, hids = rnn_forward_seq(category_seq, input_seq, hidden0, params)
    jax.block_until_ready((outs, hids))
    assert outs.shape == (T, B, output_size) and hids.shape == (T, B, hidden_size)
    assert jnp.allclose(outs, outs_ref, atol=1e-4, rtol=1e-4)
    assert jnp.allclose(hids, hids_ref, atol=1e-4, rtol=1e-4)

    # Chunked time axis (exercises the hidden carry across grid steps).
    outs_c, hids_c = rnn_forward_seq(category_seq, input_seq, hidden0, params,
                                     time_block=4)
    jax.block_until_ready((outs_c, hids_c))
    assert jnp.allclose(outs_c, outs_ref, atol=1e-4, rtol=1e-4)
    assert jnp.allclose(hids_c, hids_ref, atol=1e-4, rtol=1e-4)

    # Single-step API (matches RNN.forward signature) with B=2 -> exercises the
    # batch-padding path (padded to 8 internally, sliced back).
    out1, hid1 = rnn_forward(category_seq[0, :2], input_seq[0, :2],
                             hidden0[:2], params)
    jax.block_until_ready((out1, hid1))
    out1_ref, hid1_ref = rnn_step_ref(category_seq[0, :2], input_seq[0, :2],
                                      hidden0[:2], params)
    assert jnp.allclose(out1, out1_ref, atol=1e-4, rtol=1e-4)
    assert jnp.allclose(hid1, hid1_ref, atol=1e-4, rtol=1e-4)

    print("KERNEL_OK")
</pallas_src>

<mosaic_0001>
module attributes {stable_mosaic.version = 11 : i64} {
  func.func @_rnn_chunk_kernel(%arg0: i32, %arg1: i32, %arg2: memref<8x8x24xf32, #tpu.memory_space<vmem>>, %arg3: memref<8x32xf32, #tpu.memory_space<vmem>>, %arg4: memref<24x48xf32, #tpu.memory_space<vmem>>, %arg5: memref<32x48xf32, #tpu.memory_space<vmem>>, %arg6: memref<1x48xf32, #tpu.memory_space<vmem>>, %arg7: memref<48x16xf32, #tpu.memory_space<vmem>>, %arg8: memref<1x16xf32, #tpu.memory_space<vmem>>, %arg9: memref<8x8x128xf32, #tpu.memory_space<vmem>>, %arg10: memref<8x32xf32, #tpu.memory_space<vmem>>, %arg11: memref<8x8x48xf32, #tpu.memory_space<vmem>>) attributes {dimension_semantics = [#tpu.dimension_semantics<parallel>, #tpu.dimension_semantics<arbitrary>], iteration_bounds = array<i64: 1, 1>, scalar_prefetch = 0 : i64, scratch_operands = 2 : i64, tpu.core_type = #tpu.core_type<tc>, window_params = [{transform_indices = @transform_0, window_bounds = array<i64: 8, 8, 24>}, {transform_indices = @transform_1, window_bounds = array<i64: 8, 32>}, {pipeline_mode = #tpu.pipeline_mode<synchronous>, transform_indices = @transform_2, window_bounds = array<i64: 24, 48>}, {pipeline_mode = #tpu.pipeline_mode<synchronous>, transform_indices = @transform_3, window_bounds = array<i64: 32, 48>}, {pipeline_mode = #tpu.pipeline_mode<synchronous>, transform_indices = @transform_4, window_bounds = array<i64: 1, 48>}, {pipeline_mode = #tpu.pipeline_mode<synchronous>, transform_indices = @transform_5, window_bounds = array<i64: 48, 16>}, {pipeline_mode = #tpu.pipeline_mode<synchronous>, transform_indices = @transform_6, window_bounds = array<i64: 1, 16>}, {transform_indices = @transform_7, window_bounds = array<i64: 8, 8, 128>}]} {
    %c0_i32 = arith.constant 0 : i32
    %0 = arith.cmpi eq, %arg1, %c0_i32 : i32
    %1 = arith.extui %0 : i1 to i32
    %c0_i32_0 = arith.constant 0 : i32
    %2 = arith.cmpi ne, %1, %c0_i32_0 : i32
    scf.if %2 {
      %c0_71 = arith.constant 0 : index
      %c0_72 = arith.constant 0 : index
      %118 = vector.load %arg3[%c0_71, %c0_72] : memref<8x32xf32, #tpu.memory_space<vmem>>, vector<8x32xf32>
      %c0_73 = arith.constant 0 : index
      %c0_74 = arith.constant 0 : index
      %119 = vector.load %arg10[%c0_73, %c0_74] : memref<8x32xf32, #tpu.memory_space<vmem>>, vector<8x32xf32>
      tpu.vector_store %arg10[%c0_73, %c0_74], %118 {strides = array<i32>} : memref<8x32xf32, #tpu.memory_space<vmem>>, vector<8x32xf32>,
    } else {
    }
    %c0 = arith.constant 0 : index
    %c0_1 = arith.constant 0 : index
    %c0_2 = arith.constant 0 : index
    %3 = vector.load %arg2[%c0, %c0_1, %c0_2] : memref<8x8x24xf32, #tpu.memory_space<vmem>>, vector<8x8x24xf32>
    %4 = vector.shape_cast %3 : vector<8x8x24xf32> to vector<64x24xf32>
    %c0_3 = arith.constant 0 : index
    %c0_4 = arith.constant 0 : index
    %5 = vector.load %arg4[%c0_3, %c0_4] : memref<24x48xf32, #tpu.memory_space<vmem>>, vector<24x48xf32>
    %cst = arith.constant dense<0.000000e+00> : vector<64x48xf32>
    %6 = tpu.matmul %4, %5, %cst {dimension_numbers = #tpu.dot_dimension_numbers<[1], [0], [0], [1], [0, 0, 1, 1], [], []>} : vector<64x24xf32>, vector<24x48xf32>, vector<64x48xf32> -> vector<64x48xf32>
    %c0_5 = arith.constant 0 : index
    %c0_6 = arith.constant 0 : index
    %7 = vector.load %arg6[%c0_5, %c0_6] : memref<1x48xf32, #tpu.memory_space<vmem>>, vector<1x48xf32>
    %8 = vector.broadcast %7 : vector<1x48xf32> to vector<64x48xf32>
    %9 = arith.addf %6, %8 : vector<64x48xf32>
    %10 = vector.shape_cast %9 : vector<64x48xf32> to vector<8x8x48xf32>
    %c0_7 = arith.constant 0 : index
    %c0_8 = arith.constant 0 : index
    %c0_9 = arith.constant 0 : index
    %11 = vector.load %arg11[%c0_7, %c0_8, %c0_9] : memref<8x8x48xf32, #tpu.memory_space<vmem>>, vector<8x8x48xf32>
    tpu.vector_store %arg11[%c0_7, %c0_8, %c0_9], %10 {strides = array<i32>} : memref<8x8x48xf32, #tpu.memory_space<vmem>>, vector<8x8x48xf32>,
    %c0_10 = arith.constant 0 : index
    %c0_11 = arith.constant 0 : index
    %12 = vector.load %arg5[%c0_10, %c0_11] : memref<32x48xf32, #tpu.memory_space<vmem>>, vector<32x48xf32>
    %c0_12 = arith.constant 0 : index
    %c0_13 = arith.constant 0 : index
    %13 = vector.load %arg10[%c0_12, %c0_13] : memref<8x32xf32, #tpu.memory_space<vmem>>, vector<8x32xf32>
    %c0_i32_14 = arith.constant 0 : i32
    %14 = arith.index_cast %c0_i32_14 : i32 to index
    %c0_15 = arith.constant 0 : index
    %c0_16 = arith.constant 0 : index
    %15 = vector.load %arg11[%14, %c0_15, %c0_16] : memref<8x8x48xf32, #tpu.memory_space<vmem>>, vector<1x8x48xf32>
    %16 = vector.shape_cast %15 : vector<1x8x48xf32> to vector<8x48xf32>
    %cst_17 = arith.constant dense<0.000000e+00> : vector<8x48xf32>
    %17 = tpu.matmul %13, %12, %cst_17 {dimension_numbers = #tpu.dot_dimension_numbers<[1], [0], [0], [1], [0, 0, 1, 1], [], []>} : vector<8x32xf32>, vector<32x48xf32>, vector<8x48xf32> -> vector<8x48xf32>
    %18 = arith.addf %16, %17 : vector<8x48xf32>
    %19 = arith.index_cast %c0_i32_14 : i32 to index
    %c0_18 = arith.constant 0 : index
    %c0_19 = arith.constant 0 : index
    %20 = vector.load %arg11[%19, %c0_18, %c0_19] : memref<8x8x48xf32, #tpu.memory_space<vmem>>, vector<1x8x48xf32>
    %21 = vector.shape_cast %20 : vector<1x8x48xf32> to vector<8x48xf32>
    %22 = vector.shape_cast %18 : vector<8x48xf32> to vector<1x8x48xf32>
    tpu.vector_store %arg11[%19, %c0_18, %c0_19], %22 {strides = array<i32>} : memref<8x8x48xf32, #tpu.memory_space<vmem>>, vector<1x8x48xf32>,
    %23 = vector.extract_strided_slice %18 {offsets = [0, 0], sizes = [8, 32], strides = [1, 1]} : vector<8x48xf32> to vector<8x32xf32>
    %c1_i32 = arith.constant 1 : i32
    %24 = arith.index_cast %c1_i32 : i32 to index
    %c0_20 = arith.constant 0 : index
    %c0_21 = arith.constant 0 : index
    %25 = vector.load %arg11[%24, %c0_20, %c0_21] : memref<8x8x48xf32, #tpu.memory_space<vmem>>, vector<1x8x48xf32>
    %26 = vector.shape_cast %25 : vector<1x8x48xf32> to vector<8x48xf32>
    %cst_22 = arith.constant dense<0.000000e+00> : vector<8x48xf32>
    %27 = tpu.matmul %23, %12, %cst_22 {dimension_numbers = #tpu.dot_dimension_numbers<[1], [0], [0], [1], [0, 0, 1, 1], [], []>} : vector<8x32xf32>, vector<32x48xf32>, vector<8x48xf32> -> vector<8x48xf32>
    %28 = arith.addf %26, %27 : vector<8x48xf32>
    %29 = arith.index_cast %c1_i32 : i32 to index
    %c0_23 = arith.constant 0 : index
    %c0_24 = arith.constant 0 : index
    %30 = vector.load %arg11[%29, %c0_23, %c0_24] : memref<8x8x48xf32, #tpu.memory_space<vmem>>, vector<1x8x48xf32>
    %31 = vector.shape_cast %30 : vector<1x8x48xf32> to vector<8x48xf32>
    %32 = vector.shape_cast %28 : vector<8x48xf32> to vector<1x8x48xf32>
    tpu.vector_store %arg11[%29, %c0_23, %c0_24], %32 {strides = array<i32>} : memref<8x8x48xf32, #tpu.memory_space<vmem>>, vector<1x8x48xf32>,
    %33 = vector.extract_strided_slice %28 {offsets = [0, 0], sizes = [8, 32], strides = [1, 1]} : vector<8x48xf32> to vector<8x32xf32>
    %c2_i32 = arith.constant 2 : i32
    %34 = arith.index_cast %c2_i32 : i32 to index
    %c0_25 = arith.constant 0 : index
    %c0_26 = arith.constant 0 : index
    %35 = vector.load %arg11[%34, %c0_25, %c0_26] : memref<8x8x48xf32, #tpu.memory_space<vmem>>, vector<1x8x48xf32>
    %36 = vector.shape_cast %35 : vector<1x8x48xf32> to vector<8x48xf32>
    %cst_27 = arith.constant dense<0.000000e+00> : vector<8x48xf32>
    %37 = tpu.matmul %33, %12, %cst_27 {dimension_numbers = #tpu.dot_dimension_numbers<[1], [0], [0], [1], [0, 0, 1, 1], [], []>} : vector<8x32xf32>, vector<32x48xf32>, vector<8x48xf32> -> vector<8x48xf32>
    %38 = arith.addf %36, %37 : vector<8x48xf32>
    %39 = arith.index_cast %c2_i32 : i32 to index
    %c0_28 = arith.constant 0 : index
    %c0_29 = arith.constant 0 : index
    %40 = vector.load %arg11[%39, %c0_28, %c0_29] : memref<8x8x48xf32, #tpu.memory_space<vmem>>, vector<1x8x48xf32>
    %41 = vector.shape_cast %40 : vector<1x8x48xf32> to vector<8x48xf32>
    %42 = vector.shape_cast %38 : vector<8x48xf32> to vector<1x8x48xf32>
    tpu.vector_store %arg11[%39, %c0_28, %c0_29], %42 {strides = array<i32>} : memref<8x8x48xf32, #tpu.memory_space<vmem>>, vector<1x8x48xf32>,
    %43 = vector.extract_strided_slice %38 {offsets = [0, 0], sizes = [8, 32], strides = [1, 1]} : vector<8x48xf32> to vector<8x32xf32>
    %c3_i32 = arith.constant 3 : i32
    %44 = arith.index_cast %c3_i32 : i32 to index
    %c0_30 = arith.constant 0 : index
    %c0_31 = arith.constant 0 : index
    %45 = vector.load %arg11[%44, %c0_30, %c0_31] : memref<8x8x48xf32, #tpu.memory_space<vmem>>, vector<1x8x48xf32>
    %46 = vector.shape_cast %45 : vector<1x8x48xf32> to vector<8x48xf32>
    %cst_32 = arith.constant dense<0.000000e+00> : vector<8x48xf32>
    %47 = tpu.matmul %43, %12, %cst_32 {dimension_numbers = #tpu.dot_dimension_numbers<[1], [0], [0], [1], [0, 0, 1, 1], [], []>} : vector<8x32xf32>, vector<32x48xf32>, vector<8x48xf32> -> vector<8x48xf32>
    %48 = arith.addf %46, %47 : vector<8x48xf32>
    %49 = arith.index_cast %c3_i32 : i32 to index
    %c0_33 = arith.constant 0 : index
    %c0_34 = arith.constant 0 : index
    %50 = vector.load %arg11[%49, %c0_33, %c0_34] : memref<8x8x48xf32, #tpu.memory_space<vmem>>, vector<1x8x48xf32>
    %51 = vector.shape_cast %50 : vector<1x8x48xf32> to vector<8x48xf32>
    %52 = vector.shape_cast %48 : vector<8x48xf32> to vector<1x8x48xf32>
    tpu.vector_store %arg11[%49, %c0_33, %c0_34], %52 {strides = array<i32>} : memref<8x8x48xf32, #tpu.memory_space<vmem>>, vector<1x8x48xf32>,
    %53 = vector.extract_strided_slice %48 {offsets = [0, 0], sizes = [8, 32], strides = [1, 1]} : vector<8x48xf32> to vector<8x32xf32>
    %c4_i32 = arith.constant 4 : i32
    %54 = arith.index_cast %c4_i32 : i32 to index
    %c0_35 = arith.constant 0 : index
    %c0_36 = arith.constant 0 : index
    %55 = vector.load %arg11[%54, %c0_35, %c0_36] : memref<8x8x48xf32, #tpu.memory_space<vmem>>, vector<1x8x48xf32>
    %56 = vector.shape_cast %55 : vector<1x8x48xf32> to vector<8x48xf32>
    %cst_37 = arith.constant dense<0.000000e+00> : vector<8x48xf32>
    %57 = tpu.matmul %53, %12, %cst_37 {dimension_numbers = #tpu.dot_dimension_numbers<[1], [0], [0], [1], [0, 0, 1, 1], [], []>} : vector<8x32xf32>, vector<32x48xf32>, vector<8x48xf32> -> vector<8x48xf32>
    %58 = arith.addf %56, %57 : vector<8x48xf32>
    %59 = arith.index_cast %c4_i32 : i32 to index
    %c0_38 = arith.constant 0 : index
    %c0_39 = arith.constant 0 : index
    %60 = vector.load %arg11[%59, %c0_38, %c0_39] : memref<8x8x48xf32, #tpu.memory_space<vmem>>, vector<1x8x48xf32>
    %61 = vector.shape_cast %60 : vector<1x8x48xf32> to vector<8x48xf32>
    %62 = vector.shape_cast %58 : vector<8x48xf32> to vector<1x8x48xf32>
    tpu.vector_store %arg11[%59, %c0_38, %c0_39], %62 {strides = array<i32>} : memref<8x8x48xf32, #tpu.memory_space<vmem>>, vector<1x8x48xf32>,
    %63 = vector.extract_strided_slice %58 {offsets = [0, 0], sizes = [8, 32], strides = [1, 1]} : vector<8x48xf32> to vector<8x32xf32>
    %c5_i32 = arith.constant 5 : i32
    %64 = arith.index_cast %c5_i32 : i32 to index
    %c0_40 = arith.constant 0 : index
    %c0_41 = arith.constant 0 : index
    %65 = vector.load %arg11[%64, %c0_40, %c0_41] : memref<8x8x48xf32, #tpu.memory_space<vmem>>, vector<1x8x48xf32>
    %66 = vector.shape_cast %65 : vector<1x8x48xf32> to vector<8x48xf32>
    %cst_42 = arith.constant dense<0.000000e+00> : vector<8x48xf32>
    %67 = tpu.matmul %63, %12, %cst_42 {dimension_numbers = #tpu.dot_dimension_numbers<[1], [0], [0], [1], [0, 0, 1, 1], [], []>} : vector<8x32xf32>, vector<32x48xf32>, vector<8x48xf32> -> vector<8x48xf32>
    %68 = arith.addf %66, %67 : vector<8x48xf32>
    %69 = arith.index_cast %c5_i32 : i32 to index
    %c0_43 = arith.constant 0 : index
    %c0_44 = arith.constant 0 : index
    %70 = vector.load %arg11[%69, %c0_43, %c0_44] : memref<8x8x48xf32, #tpu.memory_space<vmem>>, vector<1x8x48xf32>
    %71 = vector.shape_cast %70 : vector<1x8x48xf32> to vector<8x48xf32>
    %72 = vector.shape_cast %68 : vector<8x48xf32> to vector<1x8x48xf32>
    tpu.vector_store %arg11[%69, %c0_43, %c0_44], %72 {strides = array<i32>} : memref<8x8x48xf32, #tpu.memory_space<vmem>>, vector<1x8x48xf32>,
    %73 = vector.extract_strided_slice %68 {offsets = [0, 0], sizes = [8, 32], strides = [1, 1]} : vector<8x48xf32> to vector<8x32xf32>
    %c6_i32 = arith.constant 6 : i32
    %74 = arith.index_cast %c6_i32 : i32 to index
    %c0_45 = arith.constant 0 : index
    %c0_46 = arith.constant 0 : index
    %75 = vector.load %arg11[%74, %c0_45, %c0_46] : memref<8x8x48xf32, #tpu.memory_space<vmem>>, vector<1x8x48xf32>
    %76 = vector.shape_cast %75 : vector<1x8x48xf32> to vector<8x48xf32>
    %cst_47 = arith.constant dense<0.000000e+00> : vector<8x48xf32>
    %77 = tpu.matmul %73, %12, %cst_47 {dimension_numbers = #tpu.dot_dimension_numbers<[1], [0], [0], [1], [0, 0, 1, 1], [], []>} : vector<8x32xf32>, vector<32x48xf32>, vector<8x48xf32> -> vector<8x48xf32>
    %78 = arith.addf %76, %77 : vector<8x48xf32>
    %79 = arith.index_cast %c6_i32 : i32 to index
    %c0_48 = arith.constant 0 : index
    %c0_49 = arith.constant 0 : index
    %80 = vector.load %arg11[%79, %c0_48, %c0_49] : memref<8x8x48xf32, #tpu.memory_space<vmem>>, vector<1x8x48xf32>
    %81 = vector.shape_cast %80 : vector<1x8x48xf32> to vector<8x48xf32>
    %82 = vector.shape_cast %78 : vector<8x48xf32> to vector<1x8x48xf32>
    tpu.vector_store %arg11[%79, %c0_48, %c0_49], %82 {strides = array<i32>} : memref<8x8x48xf32, #tpu.memory_space<vmem>>, vector<1x8x48xf32>,
    %83 = vector.extract_strided_slice %78 {offsets = [0, 0], sizes = [8, 32], strides = [1, 1]} : vector<8x48xf32> to vector<8x32xf32>
    %c7_i32 = arith.constant 7 : i32
    %84 = arith.index_cast %c7_i32 : i32 to index
    %c0_50 = arith.constant 0 : index
    %c0_51 = arith.constant 0 : index
    %85 = vector.load %arg11[%84, %c0_50, %c0_51] : memref<8x8x48xf32, #tpu.memory_space<vmem>>, vector<1x8x48xf32>
    %86 = vector.shape_cast %85 : vector<1x8x48xf32> to vector<8x48xf32>
    %cst_52 = arith.constant dense<0.000000e+00> : vector<8x48xf32>
    %87 = tpu.matmul %83, %12, %cst_52 {dimension_numbers = #tpu.dot_dimension_numbers<[1], [0], [0], [1], [0, 0, 1, 1], [], []>} : vector<8x32xf32>, vector<32x48xf32>, vector<8x48xf32> -> vector<8x48xf32>
    %88 = arith.addf %86, %87 : vector<8x48xf32>
    %89 = arith.index_cast %c7_i32 : i32 to index
    %c0_53 = arith.constant 0 : index
    %c0_54 = arith.constant 0 : index
    %90 = vector.load %arg11[%89, %c0_53, %c0_54] : memref<8x8x48xf32, #tpu.memory_space<vmem>>, vector<1x8x48xf32>
    %91 = vector.shape_cast %90 : vector<1x8x48xf32> to vector<8x48xf32>
    %92 = vector.shape_cast %88 : vector<8x48xf32> to vector<1x8x48xf32>
    tpu.vector_store %arg11[%89, %c0_53, %c0_54], %92 {strides = array<i32>} : memref<8x8x48xf32, #tpu.memory_space<vmem>>, vector<1x8x48xf32>,
    %93 = vector.extract_strided_slice %88 {offsets = [0, 0], sizes = [8, 32], strides = [1, 1]} : vector<8x48xf32> to vector<8x32xf32>
    %c8_i32 = arith.constant 8 : i32
    %c0_55 = arith.constant 0 : index
    %c0_56 = arith.constant 0 : index
    %94 = vector.load %arg10[%c0_55, %c0_56] : memref<8x32xf32, #tpu.memory_space<vmem>>, vector<8x32xf32>
    tpu.vector_store %arg10[%c0_55, %c0_56], %93 {strides = array<i32>} : memref<8x32xf32, #tpu.memory_space<vmem>>, vector<8x32xf32>,
    %c0_57 = arith.constant 0 : index
    %c0_58 = arith.constant 0 : index
    %c0_59 = arith.constant 0 : index
    %95 = vector.load %arg11[%c0_57, %c0_58, %c0_59] : memref<8x8x48xf32, #tpu.memory_space<vmem>>, vector<8x8x48xf32>
    %96 = vector.shape_cast %95 : vector<8x8x48xf32> to vector<64x48xf32>
    %c0_60 = arith.constant 0 : index
    %c0_61 = arith.constant 0 : index
    %97 = vector.load %arg7[%c0_60, %c0_61] : memref<48x16xf32, #tpu.memory_space<vmem>>, vector<48x16xf32>
    %cst_62 = arith.constant dense<0.000000e+00> : vector<64x16xf32>
    %98 = tpu.matmul %96, %97, %cst_62 {dimension_numbers = #tpu.dot_dimension_numbers<[1], [0], [0], [1], [0, 0, 1, 1], [], []>} : vector<64x48xf32>, vector<48x16xf32>, vector<64x16xf32> -> vector<64x16xf32>
    %c0_63 = arith.constant 0 : index
    %c0_64 = arith.constant 0 : index
    %99 = vector.load %arg8[%c0_63, %c0_64] : memref<1x16xf32, #tpu.memory_space<vmem>>, vector<1x16xf32>
    %100 = vector.broadcast %99 : vector<1x16xf32> to vector<64x16xf32>
    %101 = arith.addf %98, %100 : vector<64x16xf32>
    %cst_65 = arith.constant dense<0xFF800000> : vector<64xf32>
    %102 = vector.multi_reduction <maximumf>, %101, %cst_65 [1] : vector<64x16xf32> to vector<64xf32>
    %103 = vector.shape_cast %102 : vector<64xf32> to vector<64x1xf32>
    %104 = vector.broadcast %103 : vector<64x1xf32> to vector<64x16xf32>
    %105 = arith.subf %101, %104 : vector<64x16xf32>
    %106 = math.exp %105 : vector<64x16xf32>
    %cst_66 = arith.constant dense<0.000000e+00> : vector<64xf32>
    %107 = vector.multi_reduction <add>, %106, %cst_66 [1] : vector<64x16xf32> to vector<64xf32>
    %108 = vector.shape_cast %107 : vector<64xf32> to vector<64x1xf32>
    %109 = math.log %108 : vector<64x1xf32>
    %110 = arith.addf %103, %109 : vector<64x1xf32>
    %111 = vector.broadcast %110 : vector<64x1xf32> to vector<64x16xf32>
    %112 = arith.subf %101, %111 : vector<64x16xf32>
    %113 = vector.extract_strided_slice %96 {offsets = [0, 0], sizes = [64, 32], strides = [1, 1]} : vector<64x48xf32> to vector<64x32xf32>
    %cst_67 = arith.constant 0.000000e+00 : f32
    %114 = vector.broadcast %cst_67 : f32 to vector<64x80xf32>
    %115 = tpu.concatenate %112, %113, %114 in 1 : vector<64x16xf32>, vector<64x32xf32>, vector<64x80xf32> -> vector<64x128xf32>
    %116 = vector.shape_cast %115 : vector<64x128xf32> to vector<8x8x128xf32>
    %c0_68 = arith.constant 0 : index
    %c0_69 = arith.constant 0 : index
    %c0_70 = arith.constant 0 : index
    %117 = vector.load %arg9[%c0_68, %c0_69, %c0_70] : memref<8x8x128xf32, #tpu.memory_space<vmem>>, vector<8x8x128xf32>
    tpu.vector_store %arg9[%c0_68, %c0_69, %c0_70], %116 {strides = array<i32>} : memref<8x8x128xf32, #tpu.memory_space<vmem>>, vector<8x8x128xf32>,
    return
  }
  func.func @transform_0(%arg0: i32, %arg1: i32) -> (i32, i32, i32) {
    %c0_i32 = arith.constant 0 : i32
    %c0_i32_0 = arith.constant 0 : i32
    return %arg1, %arg0, %c0_i32 : i32, i32, i32
  }
  func.func @transform_1(%arg0: i32, %arg1: i32) -> (i32, i32) {
    %c0_i32 = arith.constant 0 : i32
    %c0_i32_0 = arith.constant 0 : i32
    return %arg0, %c0_i32 : i32, i32
  }
  func.func @transform_2(%arg0: i32, %arg1: i32) -> (i32, i32) {
    %c0_i32 = arith.constant 0 : i32
    %c0_i32_0 = arith.constant 0 : i32
    %c0_i32_1 = arith.constant 0 : i32
    return %c0_i32, %c0_i32_0 : i32, i32
  }
  func.func @transform_3(%arg0: i32, %arg1: i32) -> (i32, i32) {
    %c0_i32 = arith.constant 0 : i32
    %c0_i32_0 = arith.constant 0 : i32
    %c0_i32_1 = arith.constant 0 : i32
    return %c0_i32, %c0_i32_0 : i32, i32
  }
  func.func @transform_4(%arg0: i32, %arg1: i32) -> (i32, i32) {
    %c0_i32 = arith.constant 0 : i32
    %c0_i32_0 = arith.constant 0 : i32
    %c0_i32_1 = arith.constant 0 : i32
    return %c0_i32, %c0_i32_0 : i32, i32
  }
  func.func @transform_5(%arg0: i32, %arg1: i32) -> (i32, i32) {
    %c0_i32 = arith.constant 0 : i32
    %c0_i32_0 = arith.constant 0 : i32
    %c0_i32_1 = arith.constant 0 : i32
    return %c0_i32, %c0_i32_0 : i32, i32
  }
  func.func @transform_6(%arg0: i32, %arg1: i32) -> (i32, i32) {
    %c0_i32 = arith.constant 0 : i32
    %c0_i32_0 = arith.constant 0 : i32
    %c0_i32_1 = arith.constant 0 : i32
    return %c0_i32, %c0_i32_0 : i32, i32
  }
  func.func @transform_7(%arg0: i32, %arg1: i32) -> (i32, i32, i32) {
    %c0_i32 = arith.constant 0 : i32
    %c0_i32_0 = arith.constant 0 : i32
    return %arg1, %arg0, %c0_i32 : i32, i32, i32
  }
}

</mosaic_0001>

<llo_original>
// kernel: tpu_custom_call.1
$region0: #{tpu_custom_call.1}
  #allocation0 [shape = 'u32[]', space=smem, size = 0x4, offset = 0x4, fixed_abs, tag = 'smem constant byte address 0x4 - core index']
  #allocation1 [shape = 'u32[144,128]{1,0:T(1,128)}', space=vmem, size = 0x12000, scoped, tag = 'internal scratch']
  #allocation2 [shape = 'f32[8,32]{1,0:T(8,128)}', space=vmem, size = 0x1000, scoped, tag = 'scratch operand']
  #allocation3 [shape = 'f32[8,8,48]{2,1,0:T(8,128)}', space=vmem, size = 0x8000, scoped, tag = 'scratch operand']
  %s0 = inlined_call_operand.vmem [shape: f32[8,8,24], index: 0, kind: input, shape index: {}]
  %s1 = inlined_call_operand.hbm [shape: f32[8,32], index: 1, kind: input, shape index: {}]
  %s2 = inlined_call_operand.hbm [shape: f32[24,48], index: 2, kind: input, shape index: {}]
  %s3 = inlined_call_operand.hbm [shape: f32[32,48], index: 3, kind: input, shape index: {}]
  %s4 = inlined_call_operand.vmem [shape: f32[1,48], index: 4, kind: input, shape index: {}]
  %s5 = inlined_call_operand.vmem [shape: f32[48,16], index: 5, kind: input, shape index: {}]
  %s6 = inlined_call_operand.vmem [shape: f32[1,16], index: 6, kind: input, shape index: {}]
  %s7 = inlined_call_operand.hbm [shape: f32[8,8,128], index: 7, kind: output, shape index: {}]
  %s8 = sld [smem:[#allocation0]]
  $region54: #{tpu_custom_call.1} parent=0
    _
  %s10 = ssub.s32 1, %s8
  %s11 = scalar_select 0, %s10, %s8
  $region1: #{tpu_custom_call.1} parent=0
    #allocation4 [shape = 'u8[4096]{0}', space=vmem, size = 0x1000, scoped, tag = 'input window, operand 1, single buffered']
    #allocation5 [shape = 's32[1]{0}', space=sflag, size = 0x4, scoped, tag = 'scoped memory for tpu_custom_call.1']
    #allocation6 [shape = 's32[1]{0}', space=sflag, size = 0x4, scoped, tag = 'scoped memory for tpu_custom_call.1']
    #allocation7 [shape = 'u8[12288]{0}', space=vmem, size = 0x3000, scoped, tag = 'input window, operand 2, single buffered']
    #allocation8 [shape = 's32[1]{0}', space=sflag, size = 0x4, scoped, tag = 'scoped memory for tpu_custom_call.1']
    #allocation9 [shape = 'u8[16384]{0}', space=vmem, size = 0x4000, scoped, tag = 'input window, operand 3, single buffered']
    #allocation10 [shape = 'u8[32768]{0}', space=vmem, size = 0x8000, scoped, tag = 'output window, operand 0, single buffered']
    %12 = vsyncpa [#allocation5], 0
    %13 = vsyncpa [#allocation8], 0
    %14 = vsyncpa [#allocation6], 0
    // Predicated region
    $region2: #{tpu_custom_call.1} parent=1 // pred_check
      _
    $region3: #{tpu_custom_call.1} parent=1 // pred_check_branch
      %16 = sbr.rel (0) target = $region5
    $region4: #{tpu_custom_call.1} parent=1 // pred_region
      _
    $region5: #{tpu_custom_call.1} parent=1 // pred_fallthru
      _
    // Predicated region
    $region6: #{tpu_custom_call.1} parent=1 // pred_check
      _
    $region7: #{tpu_custom_call.1} parent=1 // pred_check_branch
      %18 = sbr.rel (0) target = $region9
    $region8: #{tpu_custom_call.1} parent=1 // pred_region
      %s20 = ssub.s32 128, 128
      %21 = vsyncadd [#allocation5], %s20
      %s23 = sshll.u32 [#allocation4], 4
      %s24 = int_to_ptr.vmem [resolvable:$true] %s23
      %26 = dma.hbm_to_vmem [thread:$0]  %s1, 128, %s24, [#allocation5]
    $region9: #{tpu_custom_call.1} parent=1 // pred_fallthru
      _
    // Predicated region
    $region10: #{tpu_custom_call.1} parent=1 // pred_check
      _
    $region11: #{tpu_custom_call.1} parent=1 // pred_check_branch
      %28 = sbr.rel (0) target = $region13
    $region12: #{tpu_custom_call.1} parent=1 // pred_region
      %s30 = ssub.s32 384, 384
      %31 = vsyncadd [#allocation8], %s30
      %s32 = sshll.u32 [#allocation7], 4
      %s33 = int_to_ptr.vmem [resolvable:$true] %s32
      %38 = dma.hbm_to_vmem [thread:$0]  %s2, 384, %s33, [#allocation8], 128, 128, 8
    $region13: #{tpu_custom_call.1} parent=1 // pred_fallthru
      _
    // Predicated region
    $region14: #{tpu_custom_call.1} parent=1 // pred_check
      _
    $region15: #{tpu_custom_call.1} parent=1 // pred_check_branch
      %40 = sbr.rel (0) target = $region17
    $region16: #{tpu_custom_call.1} parent=1 // pred_region
      %s42 = ssub.s32 512, 512
      %43 = vsyncadd [#allocation8], %s42
      %s44 = sshll.u32 [#allocation9], 4
      %s45 = int_to_ptr.vmem [resolvable:$true] %s44
      %50 = dma.hbm_to_vmem [thread:$0]  %s3, 512, %s45, [#allocation8], 128, 128, 8
    $region17: #{tpu_custom_call.1} parent=1 // pred_fallthru
      _
    // Predicated region
    $region18: #{tpu_custom_call.1} parent=1 // pred_check
      _
    $region19: #{tpu_custom_call.1} parent=1 // pred_check_branch
      %52 = sbr.rel (0) target = $region21
    $region20: #{tpu_custom_call.1} parent=1 // pred_region
      _
    $region21: #{tpu_custom_call.1} parent=1 // pred_fallthru
      _
    // Predicated region
    $region22: #{tpu_custom_call.1} parent=1 // pred_check
      _
    $region23: #{tpu_custom_call.1} parent=1 // pred_check_branch
      %54 = sbr.rel (0) target = $region25
    $region24: #{tpu_custom_call.1} parent=1 // pred_region
      _
    $region25: #{tpu_custom_call.1} parent=1 // pred_fallthru
      _
    // Predicated region
    $region26: #{tpu_custom_call.1} parent=1 // pred_check
      _
    $region27: #{tpu_custom_call.1} parent=1 // pred_check_branch
      %56 = sbr.rel (0) target = $region29
    $region28: #{tpu_custom_call.1} parent=1 // pred_region
      _
    $region29: #{tpu_custom_call.1} parent=1 // pred_fallthru
      _
    // Predicated region
    $region30: #{tpu_custom_call.1} parent=1 // pred_check
      _
    $region31: #{tpu_custom_call.1} parent=1 // pred_check_branch
      %58 = sbr.rel (0) target = $region33
    $region32: #{tpu_custom_call.1} parent=1 // pred_region
      %59 = dma.done [#allocation5], 128
    $region33: #{tpu_custom_call.1} parent=1 // pred_fallthru
      _
    // Predicated region
    $region34: #{tpu_custom_call.1} parent=1 // pred_check
      _
    $region35: #{tpu_custom_call.1} parent=1 // pred_check_branch
      %61 = sbr.rel (0) target = $region37
    $region36: #{tpu_custom_call.1} parent=1 // pred_region
      %62 = dma.done [#allocation8], 384
    $region37: #{tpu_custom_call.1} parent=1 // pred_fallthru
      _
    // Predicated region
    $region38: #{tpu_custom_call.1} parent=1 // pred_check
      _
    $region39: #{tpu_custom_call.1} parent=1 // pred_check_branch
      %64 = sbr.rel (0) target = $region41
    $region40: #{tpu_custom_call.1} parent=1 // pred_region
      %65 = dma.done [#allocation8], 512
    $region41: #{tpu_custom_call.1} parent=1 // pred_fallthru
      _
    %p66 = scmp.eq.s32.totalorder 0, 0
    // Predicated region
    $region42: #{tpu_custom_call.1} parent=1 // pred_check
      %p67 = pneg %p66
    $region43: #{tpu_custom_call.1} parent=1 // pred_check_branch
      %69 = sbr.rel (%p67) target = $region45
    $region44: #{tpu_custom_call.1} parent=1 // pred_region
      %v70 = vld [vmem:[#allocation4] sm:$0xff]
      %vm71 = vcmask 261120
      %72 = vst.msk [vmem:[#allocation2] sm:$0xff] %vm71, %v70
    $region45: #{tpu_custom_call.1} parent=1 // pred_fallthru
      _
    %v73 = vld [vmem:[%s0] sm:$0xff]
    %v74 = vld [vmem:[%s0 + $0x8] sm:$0xff]
    %v75 = vld [vmem:[%s0 + $0x10] sm:$0xff]
    %v76 = vld [vmem:[%s0 + $0x18] sm:$0xff]
    %v77 = vld [vmem:[%s0 + $0x20] sm:$0xff]
    %v78 = vld [vmem:[%s0 + $0x28] sm:$0xff]
    %v79 = vld [vmem:[%s0 + $0x30] sm:$0xff]
    %v80 = vld [vmem:[%s0 + $0x38] sm:$0xff]
    %v81 = vld [vmem:[#allocation7] sm:$0xff]
    %v82 = vld [vmem:[#allocation7 + $0x8] sm:$0xff]
    %v83 = vld [vmem:[#allocation7 + $0x10] sm:$0xff]
    %v84 = vld [vmem:[%s4] sm:$0x1]
    %v86 = vlaneseq
    %v87 = vshrl.u32 %v86, 7
    %v88 = vsub.s32 0, %v87
    %v89 = vrot.slane %v84, %v88
    %vm91 = vcmask 195584
    %v93 = vsel %vm91, %v73, 0
    %v96 = vsel %vm91, %v74, 0
    %v99 = vsel %vm91, %v75, 0
    %v102 = vsel %vm91, %v76, 0
    %v105 = vsel %vm91, %v77, 0
    %v108 = vsel %vm91, %v78, 0
    %v111 = vsel %vm91, %v79, 0
    %v114 = vsel %vm91, %v80, 0
    %116 = vmatprep.subr.mxu0 0.0
    %117 = vmatpush1.msra.mxu0 %v81
    %118 = vmatprep.subr.mxu0 0.0
    %119 = vmatpush1.msra.mxu0 %v82
    %120 = vmatprep.subr.mxu0 0.0
    %121 = vmatpush1.msra.mxu0 %v83
    %122 = vmatprep.subr.mxu0 0.0
    %123 = vmatpush1.msra.mxu0 0.0
    %124 = vmatprep.subr.mxu0 0.0
    %125 = vmatpush1.msra.mxu0 0.0
    %126 = vmatprep.subr.mxu0 0.0
    %127 = vmatpush1.msra.mxu0 0.0
    %128 = vmatprep.subr.mxu0 0.0
    %129 = vmatpush1.msra.mxu0 0.0
    %130 = vmatprep.subr.mxu0 0.0
    %131 = vmatpush1.msra.mxu0 0.0
    %132 = vmatprep.subr.mxu0 0.0
    %133 = vmatpush1.msra.mxu0 0.0
    %134 = vmatprep.subr.mxu0 0.0
    %135 = vmatpush1.msra.mxu0 0.0
    %136 = vmatprep.subr.mxu0 0.0
    %137 = vmatpush1.msra.mxu0 0.0
    %138 = vmatprep.subr.mxu0 0.0
    %139 = vmatpush1.msra.mxu0 0.0
    %140 = vmatprep.subr.mxu0 0.0
    %141 = vmatpush1.msra.mxu0 0.0
    %142 = vmatprep.subr.mxu0 0.0
    %143 = vmatpush1.msra.mxu0 0.0
    %144 = vmatprep.subr.mxu0 0.0
    %145 = vmatpush1.msra.mxu0 0.0
    %146 = vmatprep.subr.mxu0 0.0
    %147 = vmatpush1.msra.mxu0 0.0
    %148 = vmatprep.subr.mxu0 0.0
    %149 = vmatpush1.msra.mxu0 0.0
    %150 = vmatprep.subr.mxu0 0.0
    %151 = vmatpush1.msra.mxu0 0.0
    %152 = vmatprep.subr.mxu0 0.0
    %153 = vmatpush1.msra.mxu0 0.0
    %154 = vmatprep.subr.mxu0 0.0
    %155 = vmatpush1.msra.mxu0 0.0
    %156 = vmatprep.subr.mxu0 0.0
    %157 = vmatpush1.msra.mxu0 0.0
    %158 = vmatprep.subr.mxu0 0.0
    %159 = vmatpush1.msra.mxu0 0.0
    %160 = vmatprep.subr.mxu0 0.0
    %161 = vmatpush1.msra.mxu0 0.0
    %162 = vmatprep.subr.mxu0 0.0
    %163 = vmatpush1.msra.mxu0 0.0
    %164 = vmatprep.subr.mxu0 0.0
    %165 = vmatpush1.msra.mxu0 0.0
    %166 = vmatprep.subr.mxu0 0.0
    %167 = vmatpush1.msra.mxu0 0.0
    %168 = vmatprep.subr.mxu0 0.0
    %169 = vmatpush1.msra.mxu0 0.0
    %170 = vmatprep.subr.mxu0 0.0
    %171 = vmatpush1.msra.mxu0 0.0
    %172 = vmatprep.subr.mxu0 0.0
    %173 = vmatpush1.msra.mxu0 0.0
    %174 = vmatprep.subr.mxu0 0.0
    %175 = vmatpush1.msra.mxu0 0.0
    %176 = vmatprep.subr.mxu0 0.0
    %177 = vmatpush1.msra.mxu0 0.0
    %178 = vmatprep.subr.mxu0 0.0
    %179 = vmatpush1.msra.mxu0 0.0
    %180 = vmatprep.mubr.f32.mxu0 0.0
    %181 = vmatmul.mubr.f32.gmra.mrb[0].mxu0 %v93
    %v182 = vpop.f32.mrb[0].mxu0
    %v183 = vadd.f32 %v89, %v182
    %v184 = vpop.f32.mrb[0].mxu0
    %185 = vmatprep.mubr.f32.mxu0 0.0
    %186 = vmatmul.mubr.f32.gmra.mrb[0].mxu0 %v96
    %v187 = vpop.f32.mrb[0].mxu0
    %v188 = vadd.f32 %v89, %v187
    %v189 = vpop.f32.mrb[0].mxu0
    %190 = vmatprep.mubr.f32.mxu0 0.0
    %191 = vmatmul.mubr.f32.gmra.mrb[0].mxu0 %v99
    %v192 = vpop.f32.mrb[0].mxu0
    %v193 = vadd.f32 %v89, %v192
    %v194 = vpop.f32.mrb[0].mxu0
    %195 = vmatprep.mubr.f32.mxu0 0.0
    %196 = vmatmul.mubr.f32.gmra.mrb[0].mxu0 %v102
    %v197 = vpop.f32.mrb[0].mxu0
    %v198 = vadd.f32 %v89, %v197
    %v199 = vpop.f32.mrb[0].mxu0
    %200 = vmatprep.mubr.f32.mxu0 0.0
    %201 = vmatmul.mubr.f32.gmra.mrb[0].mxu0 %v105
    %v202 = vpop.f32.mrb[0].mxu0
    %v203 = vadd.f32 %v89, %v202
    %v204 = vpop.f32.mrb[0].mxu0
    %205 = vmatprep.mubr.f32.mxu0 0.0
    %206 = vmatmul.mubr.f32.gmra.mrb[0].mxu0 %v108
    %v207 = vpop.f32.mrb[0].mxu0
    %v208 = vadd.f32 %v89, %v207
    %v209 = vpop.f32.mrb[0].mxu0
    %210 = vmatprep.mubr.f32.mxu0 0.0
    %211 = vmatmul.mubr.f32.gmra.mrb[0].mxu0 %v111
    %v212 = vpop.f32.mrb[0].mxu0
    %v213 = vadd.f32 %v89, %v212
    %v214 = vpop.f32.mrb[0].mxu0
    %215 = vmatprep.mubr.f32.mxu0 0.0
    %216 = vmatmul.mubr.f32.gmra.mrb[0].mxu0 %v114
    %v217 = vpop.f32.mrb[0].mxu0
    %v218 = vadd.f32 %v89, %v217
    %v219 = vpop.f32.mrb[0].mxu0
    %220 = vdwg.mxu0
    %vm221 = vcmask 392192
    %222 = vst.msk [vmem:[#allocation3] sm:$0xff] %vm221, %v183
    %223 = vst.msk [vmem:[#allocation3 + $0x8] sm:$0xff] %vm221, %v188
    %224 = vst.msk [vmem:[#allocation3 + $0x10] sm:$0xff] %vm221, %v193
    %225 = vst.msk [vmem:[#allocation3 + $0x18] sm:$0xff] %vm221, %v198
    %226 = vst.msk [vmem:[#allocation3 + $0x20] sm:$0xff] %vm221, %v203
    %227 = vst.msk [vmem:[#allocation3 + $0x28] sm:$0xff] %vm221, %v208
    %228 = vst.msk [vmem:[#allocation3 + $0x30] sm:$0xff] %vm221, %v213
    %229 = vst.msk [vmem:[#allocation3 + $0x38] sm:$0xff] %vm221, %v218
    %v230 = vld [vmem:[#allocation9] sm:$0xff]
    %v231 = vld [vmem:[#allocation9 + $0x8] sm:$0xff]
    %v232 = vld [vmem:[#allocation9 + $0x10] sm:$0xff]
    %v233 = vld [vmem:[#allocation9 + $0x18] sm:$0xff]
    %v234 = vld [vmem:[#allocation2] sm:$0xff]
    %v235 = vld [vmem:[#allocation3] sm:$0xff]
    %vm236 = vcmask 261120
    %v238 = vsel %vm236, %v234, 0
    %240 = vmatprep.subr.mxu0 0.0
    %241 = vmatpush1.msra.mxu0 %v230
    %242 = vmatprep.subr.mxu0 0.0
    %243 = vmatpush1.msra.mxu0 %v231
    %244 = vmatprep.subr.mxu0 0.0
    %245 = vmatpush1.msra.mxu0 %v232
    %246 = vmatprep.subr.mxu0 0.0
    %247 = vmatpush1.msra.mxu0 %v233
    %248 = vmatprep.subr.mxu0 0.0
    %249 = vmatpush1.msra.mxu0 0.0
    %250 = vmatprep.subr.mxu0 0.0
    %251 = vmatpush1.msra.mxu0 0.0
    %252 = vmatprep.subr.mxu0 0.0
    %253 = vmatpush1.msra.mxu0 0.0
    %254 = vmatprep.subr.mxu0 0.0
    %255 = vmatpush1.msra.mxu0 0.0
    %256 = vmatprep.subr.mxu0 0.0
    %257 = vmatpush1.msra.mxu0 0.0
    %258 = vmatprep.subr.mxu0 0.0
    %259 = vmatpush1.msra.mxu0 0.0
    %260 = vmatprep.subr.mxu0 0.0
    %261 = vmatpush1.msra.mxu0 0.0
    %262 = vmatprep.subr.mxu0 0.0
    %263 = vmatpush1.msra.mxu0 0.0
    %264 = vmatprep.subr.mxu0 0.0
    %265 = vmatpush1.msra.mxu0 0.0
    %266 = vmatprep.subr.mxu0 0.0
    %267 = vmatpush1.msra.mxu0 0.0
    %268 = vmatprep.subr.mxu0 0.0
    %269 = vmatpush1.msra.mxu0 0.0
    %270 = vmatprep.subr.mxu0 0.0
    %271 = vmatpush1.msra.mxu0 0.0
    %272 = vmatprep.subr.mxu0 0.0
    %273 = vmatpush1.msra.mxu0 0.0
    %274 = vmatprep.subr.mxu0 0.0
    %275 = vmatpush1.msra.mxu0 0.0
    %276 = vmatprep.subr.mxu0 0.0
    %277 = vmatpush1.msra.mxu0 0.0
    %278 = vmatprep.subr.mxu0 0.0
    %279 = vmatpush1.msra.mxu0 0.0
    %280 = vmatprep.subr.mxu0 0.0
    %281 = vmatpush1.msra.mxu0 0.0
    %282 = vmatprep.subr.mxu0 0.0
    %283 = vmatpush1.msra.mxu0 0.0
    %284 = vmatprep.subr.mxu0 0.0
    %285 = vmatpush1.msra.mxu0 0.0
    %286 = vmatprep.subr.mxu0 0.0
    %287 = vmatpush1.msra.mxu0 0.0
    %288 = vmatprep.subr.mxu0 0.0
    %289 = vmatpush1.msra.mxu0 0.0
    %290 = vmatprep.subr.mxu0 0.0
    %291 = vmatpush1.msra.mxu0 0.0
    %292 = vmatprep.subr.mxu0 0.0
    %293 = vmatpush1.msra.mxu0 0.0
    %294 = vmatprep.subr.mxu0 0.0
    %295 = vmatpush1.msra.mxu0 0.0
    %296 = vmatprep.subr.mxu0 0.0
    %297 = vmatpush1.msra.mxu0 0.0
    %298 = vmatprep.subr.mxu0 0.0
    %299 = vmatpush1.msra.mxu0 0.0
    %300 = vmatprep.subr.mxu0 0.0
    %301 = vmatpush1.msra.mxu0 0.0
    %302 = vmatprep.subr.mxu0 0.0
    %303 = vmatpush1.msra.mxu0 0.0
    %304 = vmatprep.mubr.f32.mxu0 0.0
    %305 = vmatmul.mubr.f32.gmra.mrb[0].mxu0 %v238
    %v306 = vpop.f32.mrb[0].mxu0
    %v307 = vadd.f32 0.0, %v306
    %v308 = vpop.f32.mrb[0].mxu0
    %309 = vdwg.mxu0
    %v310 = vadd.f32 %v235, %v307
    %311 = vst.msk [vmem:[#allocation3] sm:$0xff] %vm221, %v310
    %s312 = scalar_lea.vmem [#allocation3], 8
    %v313 = vld [vmem:[%s312] sm:$0xff]
    %v315 = vsel %vm236, %v310, 0
    %317 = vmatprep.subr.mxu0 0.0
    %318 = vmatpush1.msra.mxu0 %v230
    %319 = vmatprep.subr.mxu0 0.0
    %320 = vmatpush1.msra.mxu0 %v231
    %321 = vmatprep.subr.mxu0 0.0
    %322 = vmatpush1.msra.mxu0 %v232
    %323 = vmatprep.subr.mxu0 0.0
    %324 = vmatpush1.msra.mxu0 %v233
    %325 = vmatprep.subr.mxu0 0.0
    %326 = vmatpush1.msra.mxu0 0.0
    %327 = vmatprep.subr.mxu0 0.0
    %328 = vmatpush1.msra.mxu0 0.0
    %329 = vmatprep.subr.mxu0 0.0
    %330 = vmatpush1.msra.mxu0 0.0
    %331 = vmatprep.subr.mxu0 0.0
    %332 = vmatpush1.msra.mxu0 0.0
    %333 = vmatprep.subr.mxu0 0.0
    %334 = vmatpush1.msra.mxu0 0.0
    %335 = vmatprep.subr.mxu0 0.0
    %336 = vmatpush1.msra.mxu0 0.0
    %337 = vmatprep.subr.mxu0 0.0
    %338 = vmatpush1.msra.mxu0 0.0
    %339 = vmatprep.subr.mxu0 0.0
    %340 = vmatpush1.msra.mxu0 0.0
    %341 = vmatprep.subr.mxu0 0.0
    %342 = vmatpush1.msra.mxu0 0.0
    %343 = vmatprep.subr.mxu0 0.0
    %344 = vmatpush1.msra.mxu0 0.0
    %345 = vmatprep.subr.mxu0 0.0
    %346 = vmatpush1.msra.mxu0 0.0
    %347 = vmatprep.subr.mxu0 0.0
    %348 = vmatpush1.msra.mxu0 0.0
    %349 = vmatprep.subr.mxu0 0.0
    %350 = vmatpush1.msra.mxu0 0.0
    %351 = vmatprep.subr.mxu0 0.0
    %352 = vmatpush1.msra.mxu0 0.0
    %353 = vmatprep.subr.mxu0 0.0
    %354 = vmatpush1.msra.mxu0 0.0
    %355 = vmatprep.subr.mxu0 0.0
    %356 = vmatpush1.msra.mxu0 0.0
    %357 = vmatprep.subr.mxu0 0.0
    %358 = vmatpush1.msra.mxu0 0.0
    %359 = vmatprep.subr.mxu0 0.0
    %360 = vmatpush1.msra.mxu0 0.0
    %361 = vmatprep.subr.mxu0 0.0
    %362 = vmatpush1.msra.mxu0 0.0
    %363 = vmatprep.subr.mxu0 0.0
    %364 = vmatpush1.msra.mxu0 0.0
    %365 = vmatprep.subr.mxu0 0.0
    %366 = vmatpush1.msra.mxu0 0.0
    %367 = vmatprep.subr.mxu0 0.0
    %368 = vmatpush1.msra.mxu0 0.0
    %369 = vmatprep.subr.mxu0 0.0
    %370 = vmatpush1.msra.mxu0 0.0
    %371 = vmatprep.subr.mxu0 0.0
    %372 = vmatpush1.msra.mxu0 0.0
    %373 = vmatprep.subr.mxu0 0.0
    %374 = vmatpush1.msra.mxu0 0.0
    %375 = vmatprep.subr.mxu0 0.0
    %376 = vmatpush1.msra.mxu0 0.0
    %377 = vmatprep.subr.mxu0 0.0
    %378 = vmatpush1.msra.mxu0 0.0
    %379 = vmatprep.subr.mxu0 0.0
    %380 = vmatpush1.msra.mxu0 0.0
    %381 = vmatprep.mubr.f32.mxu0 0.0
    %382 = vmatmul.mubr.f32.gmra.mrb[0].mxu0 %v315
    %v383 = vpop.f32.mrb[0].mxu0
    %v384 = vadd.f32 0.0, %v383
    %v385 = vpop.f32.mrb[0].mxu0
    %386 = vdwg.mxu0
    %v387 = vadd.f32 %v313, %v384
    %388 = vst.msk [vmem:[%s312] sm:$0xff] %vm221, %v387
    %s389 = scalar_lea.vmem [#allocation3], 16
    %v390 = vld [vmem:[%s389] sm:$0xff]
    %v392 = vsel %vm236, %v387, 0
    %394 = vmatprep.subr.mxu0 0.0
    %395 = vmatpush1.msra.mxu0 %v230
    %396 = vmatprep.subr.mxu0 0.0
    %397 = vmatpush1.msra.mxu0 %v231
    %398 = vmatprep.subr.mxu0 0.0
    %399 = vmatpush1.msra.mxu0 %v232
    %400 = vmatprep.subr.mxu0 0.0
    %401 = vmatpush1.msra.mxu0 %v233
    %402 = vmatprep.subr.mxu0 0.0
    %403 = vmatpush1.msra.mxu0 0.0
    %404 = vmatprep.subr.mxu0 0.0
    %405 = vmatpush1.msra.mxu0 0.0
    %406 = vmatprep.subr.mxu0 0.0
    %407 = vmatpush1.msra.mxu0 0.0
    %408 = vmatprep.subr.mxu0 0.0
    %409 = vmatpush1.msra.mxu0 0.0
    %410 = vmatprep.subr.mxu0 0.0
    %411 = vmatpush1.msra.mxu0 0.0
    %412 = vmatprep.subr.mxu0 0.0
    %413 = vmatpush1.msra.mxu0 0.0
    %414 = vmatprep.subr.mxu0 0.0
    %415 = vmatpush1.msra.mxu0 0.0
    %416 = vmatprep.subr.mxu0 0.0
    %417 = vmatpush1.msra.mxu0 0.0
    %418 = vmatprep.subr.mxu0 0.0
    %419 = vmatpush1.msra.mxu0 0.0
    %420 = vmatprep.subr.mxu0 0.0
    %421 = vmatpush1.msra.mxu0 0.0
    %422 = vmatprep.subr.mxu0 0.0
    %423 = vmatpush1.msra.mxu0 0.0
    %424 = vmatprep.subr.mxu0 0.0
    %425 = vmatpush1.msra.mxu0 0.0
    %426 = vmatprep.subr.mxu0 0.0
    %427 = vmatpush1.msra.mxu0 0.0
    %428 = vmatprep.subr.mxu0 0.0
    %429 = vmatpush1.msra.mxu0 0.0
    %430 = vmatprep.subr.mxu0 0.0
    %431 = vmatpush1.msra.mxu0 0.0
    %432 = vmatprep.subr.mxu0 0.0
    %433 = vmatpush1.msra.mxu0 0.0
    %434 = vmatprep.subr.mxu0 0.0
    %435 = vmatpush1.msra.mxu0 0.0
    %436 = vmatprep.subr.mxu0 0.0
    %437 = vmatpush1.msra.mxu0 0.0
    %438 = vmatprep.subr.mxu0 0.0
    %439 = vmatpush1.msra.mxu0 0.0
    %440 = vmatprep.subr.mxu0 0.0
    %441 = vmatpush1.msra.mxu0 0.0
    %442 = vmatprep.subr.mxu0 0.0
    %443 = vmatpush1.msra.mxu0 0.0
    %444 = vmatprep.subr.mxu0 0.0
    %445 = vmatpush1.msra.mxu0 0.0
    %446 = vmatprep.subr.mxu0 0.0
    %447 = vmatpush1.msra.mxu0 0.0
    %448 = vmatprep.subr.mxu0 0.0
    %449 = vmatpush1.msra.mxu0 0.0
    %450 = vmatprep.subr.mxu0 0.0
    %451 = vmatpush1.msra.mxu0 0.0
    %452 = vmatprep.subr.mxu0 0.0
    %453 = vmatpush1.msra.mxu0 0.0
    %454 = vmatprep.subr.mxu0 0.0
    %455 = vmatpush1.msra.mxu0 0.0
    %456 = vmatprep.subr.mxu0 0.0
    %457 = vmatpush1.msra.mxu0 0.0
    %458 = vmatprep.mubr.f32.mxu0 0.0
    %459 = vmatmul.mubr.f32.gmra.mrb[0].mxu0 %v392
    %v460 = vpop.f32.mrb[0].mxu0
    %v461 = vadd.f32 0.0, %v460
    %v462 = vpop.f32.mrb[0].mxu0
    %463 = vdwg.mxu0
    %v464 = vadd.f32 %v390, %v461
    %465 = vst.msk [vmem:[%s389] sm:$0xff] %vm221, %v464
    %s466 = scalar_lea.vmem [#allocation3], 24
    %v467 = vld [vmem:[%s466] sm:$0xff]
    %v469 = vsel %vm236, %v464, 0
    %471 = vmatprep.subr.mxu0 0.0
    %472 = vmatpush1.msra.mxu0 %v230
    %473 = vmatprep.subr.mxu0 0.0
    %474 = vmatpush1.msra.mxu0 %v231
    %475 = vmatprep.subr.mxu0 0.0
    %476 = vmatpush1.msra.mxu0 %v232
    %477 = vmatprep.subr.mxu0 0.0
    %478 = vmatpush1.msra.mxu0 %v233
    %479 = vmatprep.subr.mxu0 0.0
    %480 = vmatpush1.msra.mxu0 0.0
    %481 = vmatprep.subr.mxu0 0.0
    %482 = vmatpush1.msra.mxu0 0.0
    %483 = vmatprep.subr.mxu0 0.0
    %484 = vmatpush1.msra.mxu0 0.0
    %485 = vmatprep.subr.mxu0 0.0
    %486 = vmatpush1.msra.mxu0 0.0
    %487 = vmatprep.subr.mxu0 0.0
    %488 = vmatpush1.msra.mxu0 0.0
    %489 = vmatprep.subr.mxu0 0.0
    %490 = vmatpush1.msra.mxu0 0.0
    %491 = vmatprep.subr.mxu0 0.0
    %492 = vmatpush1.msra.mxu0 0.0
    %493 = vmatprep.subr.mxu0 0.0
    %494 = vmatpush1.msra.mxu0 0.0
    %495 = vmatprep.subr.mxu0 0.0
    %496 = vmatpush1.msra.mxu0 0.0
    %497 = vmatprep.subr.mxu0 0.0
    %498 = vmatpush1.msra.mxu0 0.0
    %499 = vmatprep.subr.mxu0 0.0
    %500 = vmatpush1.msra.mxu0 0.0
    %501 = vmatprep.subr.mxu0 0.0
    %502 = vmatpush1.msra.mxu0 0.0
    %503 = vmatprep.subr.mxu0 0.0
    %504 = vmatpush1.msra.mxu0 0.0
    %505 = vmatprep.subr.mxu0 0.0
    %506 = vmatpush1.msra.mxu0 0.0
    %507 = vmatprep.subr.mxu0 0.0
    %508 = vmatpush1.msra.mxu0 0.0
    %509 = vmatprep.subr.mxu0 0.0
    %510 = vmatpush1.msra.mxu0 0.0
    %511 = vmatprep.subr.mxu0 0.0
    %512 = vmatpush1.msra.mxu0 0.0
    %513 = vmatprep.subr.mxu0 0.0
    %514 = vmatpush1.msra.mxu0 0.0
    %515 = vmatprep.subr.mxu0 0.0
    %516 = vmatpush1.msra.mxu0 0.0
    %517 = vmatprep.subr.mxu0 0.0
    %518 = vmatpush1.msra.mxu0 0.0
    %519 = vmatprep.subr.mxu0 0.0
    %520 = vmatpush1.msra.mxu0 0.0
    %521 = vmatprep.subr.mxu0 0.0
    %522 = vmatpush1.msra.mxu0 0.0
    %523 = vmatprep.subr.mxu0 0.0
    %524 = vmatpush1.msra.mxu0 0.0
    %525 = vmatprep.subr.mxu0 0.0
    %526 = vmatpush1.msra.mxu0 0.0
    %527 = vmatprep.subr.mxu0 0.0
    %528 = vmatpush1.msra.mxu0 0.0
    %529 = vmatprep.subr.mxu0 0.0
    %530 = vmatpush1.msra.mxu0 0.0
    %531 = vmatprep.subr.mxu0 0.0
    %532 = vmatpush1.msra.mxu0 0.0
    %533 = vmatprep.subr.mxu0 0.0
    %534 = vmatpush1.msra.mxu0 0.0
    %535 = vmatprep.mubr.f32.mxu0 0.0
    %536 = vmatmul.mubr.f32.gmra.mrb[0].mxu0 %v469
    %v537 = vpop.f32.mrb[0].mxu0
    %v538 = vadd.f32 0.0, %v537
    %v539 = vpop.f32.mrb[0].mxu0
    %540 = vdwg.mxu0
    %v541 = vadd.f32 %v467, %v538
    %542 = vst.msk [vmem:[%s466] sm:$0xff] %vm221, %v541
    %s543 = scalar_lea.vmem [#allocation3], 32
    %v544 = vld [vmem:[%s543] sm:$0xff]
    %v546 = vsel %vm236, %v541, 0
    %548 = vmatprep.subr.mxu0 0.0
    %549 = vmatpush1.msra.mxu0 %v230
    %550 = vmatprep.subr.mxu0 0.0
    %551 = vmatpush1.msra.mxu0 %v231
    %552 = vmatprep.subr.mxu0 0.0
    %553 = vmatpush1.msra.mxu0 %v232
    %554 = vmatprep.subr.mxu0 0.0
    %555 = vmatpush1.msra.mxu0 %v233
    %556 = vmatprep.subr.mxu0 0.0
    %557 = vmatpush1.msra.mxu0 0.0
    %558 = vmatprep.subr.mxu0 0.0
    %559 = vmatpush1.msra.mxu0 0.0
    %560 = vmatprep.subr.mxu0 0.0
    %561 = vmatpush1.msra.mxu0 0.0
    %562 = vmatprep.subr.mxu0 0.0
    %563 = vmatpush1.msra.mxu0 0.0
    %564 = vmatprep.subr.mxu0 0.0
    %565 = vmatpush1.msra.mxu0 0.0
    %566 = vmatprep.subr.mxu0 0.0
    %567 = vmatpush1.msra.mxu0 0.0
    %568 = vmatprep.subr.mxu0 0.0
    %569 = vmatpush1.msra.mxu0 0.0
    %570 = vmatprep.subr.mxu0 0.0
    %571 = vmatpush1.msra.mxu0 0.0
    %572 = vmatprep.subr.mxu0 0.0
    %573 = vmatpush1.msra.mxu0 0.0
    %574 = vmatprep.subr.mxu0 0.0
    %575 = vmatpush1.msra.mxu0 0.0
    %576 = vmatprep.subr.mxu0 0.0
    %577 = vmatpush1.msra.mxu0 0.0
    %578 = vmatprep.subr.mxu0 0.0
    %579 = vmatpush1.msra.mxu0 0.0
    %580 = vmatprep.subr.mxu0 0.0
    %581 = vmatpush1.msra.mxu0 0.0
    %582 = vmatprep.subr.mxu0 0.0
    %583 = vmatpush1.msra.mxu0 0.0
    %584 = vmatprep.subr.mxu0 0.0
    %585 = vmatpush1.msra.mxu0 0.0
    %586 = vmatprep.subr.mxu0 0.0
    %587 = vmatpush1.msra.mxu0 0.0
    %588 = vmatprep.subr.mxu0 0.0
    %589 = vmatpush1.msra.mxu0 0.0
    %590 = vmatprep.subr.mxu0 0.0
    %591 = vmatpush1.msra.mxu0 0.0
    %592 = vmatprep.subr.mxu0 0.0
    %593 = vmatpush1.msra.mxu0 0.0
    %594 = vmatprep.subr.mxu0 0.0
    %595 = vmatpush1.msra.mxu0 0.0
    %596 = vmatprep.subr.mxu0 0.0
    %597 = vmatpush1.msra.mxu0 0.0
    %598 = vmatprep.subr.mxu0 0.0
    %599 = vmatpush1.msra.mxu0 0.0
    %600 = vmatprep.subr.mxu0 0.0
    %601 = vmatpush1.msra.mxu0 0.0
    %602 = vmatprep.subr.mxu0 0.0
    %603 = vmatpush1.msra.mxu0 0.0
    %604 = vmatprep.subr.mxu0 0.0
    %605 = vmatpush1.msra.mxu0 0.0
    %606 = vmatprep.subr.mxu0 0.0
    %607 = vmatpush1.msra.mxu0 0.0
    %608 = vmatprep.subr.mxu0 0.0
    %609 = vmatpush1.msra.mxu0 0.0
    %610 = vmatprep.subr.mxu0 0.0
    %611 = vmatpush1.msra.mxu0 0.0
    %612 = vmatprep.mubr.f32.mxu0 0.0
    %613 = vmatmul.mubr.f32.gmra.mrb[0].mxu0 %v546
    %v614 = vpop.f32.mrb[0].mxu0
    %v615 = vadd.f32 0.0, %v614
    %v616 = vpop.f32.mrb[0].mxu0
    %617 = vdwg.mxu0
    %v618 = vadd.f32 %v544, %v615
    %619 = vst.msk [vmem:[%s543] sm:$0xff] %vm221, %v618
    %s620 = scalar_lea.vmem [#allocation3], 40
    %v621 = vld [vmem:[%s620] sm:$0xff]
    %v623 = vsel %vm236, %v618, 0
    %625 = vmatprep.subr.mxu0 0.0
    %626 = vmatpush1.msra.mxu0 %v230
    %627 = vmatprep.subr.mxu0 0.0
    %628 = vmatpush1.msra.mxu0 %v231
    %629 = vmatprep.subr.mxu0 0.0
    %630 = vmatpush1.msra.mxu0 %v232
    %631 = vmatprep.subr.mxu0 0.0
    %632 = vmatpush1.msra.mxu0 %v233
    %633 = vmatprep.subr.mxu0 0.0
    %634 = vmatpush1.msra.mxu0 0.0
    %635 = vmatprep.subr.mxu0 0.0
    %636 = vmatpush1.msra.mxu0 0.0
    %637 = vmatprep.subr.mxu0 0.0
    %638 = vmatpush1.msra.mxu0 0.0
    %639 = vmatprep.subr.mxu0 0.0
    %640 = vmatpush1.msra.mxu0 0.0
    %641 = vmatprep.subr.mxu0 0.0
    %642 = vmatpush1.msra.mxu0 0.0
    %643 = vmatprep.subr.mxu0 0.0
    %644 = vmatpush1.msra.mxu0 0.0
    %645 = vmatprep.subr.mxu0 0.0
    %646 = vmatpush1.msra.mxu0 0.0
    %647 = vmatprep.subr.mxu0 0.0
    %648 = vmatpush1.msra.mxu0 0.0
    %649 = vmatprep.subr.mxu0 0.0
    %650 = vmatpush1.msra.mxu0 0.0
    %651 = vmatprep.subr.mxu0 0.0
    %652 = vmatpush1.msra.mxu0 0.0
    %653 = vmatprep.subr.mxu0 0.0
    %654 = vmatpush1.msra.mxu0 0.0
    %655 = vmatprep.subr.mxu0 0.0
    %656 = vmatpush1.msra.mxu0 0.0
    %657 = vmatprep.subr.mxu0 0.0
    %658 = vmatpush1.msra.mxu0 0.0
    %659 = vmatprep.subr.mxu0 0.0
    %660 = vmatpush1.msra.mxu0 0.0
    %661 = vmatprep.subr.mxu0 0.0
    %662 = vmatpush1.msra.mxu0 0.0
    %663 = vmatprep.subr.mxu0 0.0
    %664 = vmatpush1.msra.mxu0 0.0
    %665 = vmatprep.subr.mxu0 0.0
    %666 = vmatpush1.msra.mxu0 0.0
    %667 = vmatprep.subr.mxu0 0.0
    %668 = vmatpush1.msra.mxu0 0.0
    %669 = vmatprep.subr.mxu0 0.0
    %670 = vmatpush1.msra.mxu0 0.0
    %671 = vmatprep.subr.mxu0 0.0
    %672 = vmatpush1.msra.mxu0 0.0
    %673 = vmatprep.subr.mxu0 0.0
    %674 = vmatpush1.msra.mxu0 0.0
    %675 = vmatprep.subr.mxu0 0.0
    %676 = vmatpush1.msra.mxu0 0.0
    %677 = vmatprep.subr.mxu0 0.0
    %678 = vmatpush1.msra.mxu0 0.0
    %679 = vmatprep.subr.mxu0 0.0
    %680 = vmatpush1.msra.mxu0 0.0
    %681 = vmatprep.subr.mxu0 0.0
    %682 = vmatpush1.msra.mxu0 0.0
    %683 = vmatprep.subr.mxu0 0.0
    %684 = vmatpush1.msra.mxu0 0.0
    %685 = vmatprep.subr.mxu0 0.0
    %686 = vmatpush1.msra.mxu0 0.0
    %687 = vmatprep.subr.mxu0 0.0
    %688 = vmatpush1.msra.mxu0 0.0
    %689 = vmatprep.mubr.f32.mxu0 0.0
    %690 = vmatmul.mubr.f32.gmra.mrb[0].mxu0 %v623
    %v691 = vpop.f32.mrb[0].mxu0
    %v692 = vadd.f32 0.0, %v691
    %v693 = vpop.f32.mrb[0].mxu0
    %694 = vdwg.mxu0
    %v695 = vadd.f32 %v621, %v692
    %696 = vst.msk [vmem:[%s620] sm:$0xff] %vm221, %v695
    %s697 = scalar_lea.vmem [#allocation3], 48
    %v698 = vld [vmem:[%s697] sm:$0xff]
    %v700 = vsel %vm236, %v695, 0
    %702 = vmatprep.subr.mxu0 0.0
    %703 = vmatpush1.msra.mxu0 %v230
    %704 = vmatprep.subr.mxu0 0.0
    %705 = vmatpush1.msra.mxu0 %v231
    %706 = vmatprep.subr.mxu0 0.0
    %707 = vmatpush1.msra.mxu0 %v232
    %708 = vmatprep.subr.mxu0 0.0
    %709 = vmatpush1.msra.mxu0 %v233
    %710 = vmatprep.subr.mxu0 0.0
    %711 = vmatpush1.msra.mxu0 0.0
    %712 = vmatprep.subr.mxu0 0.0
    %713 = vmatpush1.msra.mxu0 0.0
    %714 = vmatprep.subr.mxu0 0.0
    %715 = vmatpush1.msra.mxu0 0.0
    %716 = vmatprep.subr.mxu0 0.0
    %717 = vmatpush1.msra.mxu0 0.0
    %718 = vmatprep.subr.mxu0 0.0
    %719 = vmatpush1.msra.mxu0 0.0
    %720 = vmatprep.subr.mxu0 0.0
    %721 = vmatpush1.msra.mxu0 0.0
    %722 = vmatprep.subr.mxu0 0.0
    %723 = vmatpush1.msra.mxu0 0.0
    %724 = vmatprep.subr.mxu0 0.0
    %725 = vmatpush1.msra.mxu0 0.0
    %726 = vmatprep.subr.mxu0 0.0
    %727 = vmatpush1.msra.mxu0 0.0
    %728 = vmatprep.subr.mxu0 0.0
    %729 = vmatpush1.msra.mxu0 0.0
    %730 = vmatprep.subr.mxu0 0.0
    %731 = vmatpush1.msra.mxu0 0.0
    %732 = vmatprep.subr.mxu0 0.0
    %733 = vmatpush1.msra.mxu0 0.0
    %734 = vmatprep.subr.mxu0 0.0
    %735 = vmatpush1.msra.mxu0 0.0
    %736 = vmatprep.subr.mxu0 0.0
    %737 = vmatpush1.msra.mxu0 0.0
    %738 = vmatprep.subr.mxu0 0.0
    %739 = vmatpush1.msra.mxu0 0.0
    %740 = vmatprep.subr.mxu0 0.0
    %741 = vmatpush1.msra.mxu0 0.0
    %742 = vmatprep.subr.mxu0 0.0
    %743 = vmatpush1.msra.mxu0 0.0
    %744 = vmatprep.subr.mxu0 0.0
    %745 = vmatpush1.msra.mxu0 0.0
    %746 = vmatprep.subr.mxu0 0.0
    %747 = vmatpush1.msra.mxu0 0.0
    %748 = vmatprep.subr.mxu0 0.0
    %749 = vmatpush1.msra.mxu0 0.0
    %750 = vmatprep.subr.mxu0 0.0
    %751 = vmatpush1.msra.mxu0 0.0
    %752 = vmatprep.subr.mxu0 0.0
    %753 = vmatpush1.msra.mxu0 0.0
    %754 = vmatprep.subr.mxu0 0.0
    %755 = vmatpush1.msra.mxu0 0.0
    %756 = vmatprep.subr.mxu0 0.0
    %757 = vmatpush1.msra.mxu0 0.0
    %758 = vmatprep.subr.mxu0 0.0
    %759 = vmatpush1.msra.mxu0 0.0
    %760 = vmatprep.subr.mxu0 0.0
    %761 = vmatpush1.msra.mxu0 0.0
    %762 = vmatprep.subr.mxu0 0.0
    %763 = vmatpush1.msra.mxu0 0.0
    %764 = vmatprep.subr.mxu0 0.0
    %765 = vmatpush1.msra.mxu0 0.0
    %766 = vmatprep.mubr.f32.mxu0 0.0
    %767 = vmatmul.mubr.f32.gmra.mrb[0].mxu0 %v700
    %v768 = vpop.f32.mrb[0].mxu0
    %v769 = vadd.f32 0.0, %v768
    %v770 = vpop.f32.mrb[0].mxu0
    %771 = vdwg.mxu0
    %v772 = vadd.f32 %v698, %v769
    %773 = vst.msk [vmem:[%s697] sm:$0xff] %vm221, %v772
    %s774 = scalar_lea.vmem [#allocation3], 56
    %v775 = vld [vmem:[%s774] sm:$0xff]
    %v777 = vsel %vm236, %v772, 0
    %779 = vmatprep.subr.mxu0 0.0
    %780 = vmatpush1.msra.mxu0 %v230
    %781 = vmatprep.subr.mxu0 0.0
    %782 = vmatpush1.msra.mxu0 %v231
    %783 = vmatprep.subr.mxu0 0.0
    %784 = vmatpush1.msra.mxu0 %v232
    %785 = vmatprep.subr.mxu0 0.0
    %786 = vmatpush1.msra.mxu0 %v233
    %787 = vmatprep.subr.mxu0 0.0
    %788 = vmatpush1.msra.mxu0 0.0
    %789 = vmatprep.subr.mxu0 0.0
    %790 = vmatpush1.msra.mxu0 0.0
    %791 = vmatprep.subr.mxu0 0.0
    %792 = vmatpush1.msra.mxu0 0.0
    %793 = vmatprep.subr.mxu0 0.0
    %794 = vmatpush1.msra.mxu0 0.0
    %795 = vmatprep.subr.mxu0 0.0
    %796 = vmatpush1.msra.mxu0 0.0
    %797 = vmatprep.subr.mxu0 0.0
    %798 = vmatpush1.msra.mxu0 0.0
    %799 = vmatprep.subr.mxu0 0.0
    %800 = vmatpush1.msra.mxu0 0.0
    %801 = vmatprep.subr.mxu0 0.0
    %802 = vmatpush1.msra.mxu0 0.0
    %803 = vmatprep.subr.mxu0 0.0
    %804 = vmatpush1.msra.mxu0 0.0
    %805 = vmatprep.subr.mxu0 0.0
    %806 = vmatpush1.msra.mxu0 0.0
    %807 = vmatprep.subr.mxu0 0.0
    %808 = vmatpush1.msra.mxu0 0.0
    %809 = vmatprep.subr.mxu0 0.0
    %810 = vmatpush1.msra.mxu0 0.0
    %811 = vmatprep.subr.mxu0 0.0
    %812 = vmatpush1.msra.mxu0 0.0
    %813 = vmatprep.subr.mxu0 0.0
    %814 = vmatpush1.msra.mxu0 0.0
    %815 = vmatprep.subr.mxu0 0.0
    %816 = vmatpush1.msra.mxu0 0.0
    %817 = vmatprep.subr.mxu0 0.0
    %818 = vmatpush1.msra.mxu0 0.0
    %819 = vmatprep.subr.mxu0 0.0
    %820 = vmatpush1.msra.mxu0 0.0
    %821 = vmatprep.subr.mxu0 0.0
    %822 = vmatpush1.msra.mxu0 0.0
    %823 = vmatprep.subr.mxu0 0.0
    %824 = vmatpush1.msra.mxu0 0.0
    %825 = vmatprep.subr.mxu0 0.0
    %826 = vmatpush1.msra.mxu0 0.0
    %827 = vmatprep.subr.mxu0 0.0
    %828 = vmatpush1.msra.mxu0 0.0
    %829 = vmatprep.subr.mxu0 0.0
    %830 = vmatpush1.msra.mxu0 0.0
    %831 = vmatprep.subr.mxu0 0.0
    %832 = vmatpush1.msra.mxu0 0.0
    %833 = vmatprep.subr.mxu0 0.0
    %834 = vmatpush1.msra.mxu0 0.0
    %835 = vmatprep.subr.mxu0 0.0
    %836 = vmatpush1.msra.mxu0 0.0
    %837 = vmatprep.subr.mxu0 0.0
    %838 = vmatpush1.msra.mxu0 0.0
    %839 = vmatprep.subr.mxu0 0.0
    %840 = vmatpush1.msra.mxu0 0.0
    %841 = vmatprep.subr.mxu0 0.0
    %842 = vmatpush1.msra.mxu0 0.0
    %843 = vmatprep.mubr.f32.mxu0 0.0
    %844 = vmatmul.mubr.f32.gmra.mrb[0].mxu0 %v777
    %v845 = vpop.f32.mrb[0].mxu0
    %v846 = vadd.f32 0.0, %v845
    %v847 = vpop.f32.mrb[0].mxu0
    %848 = vdwg.mxu0
    %v849 = vadd.f32 %v775, %v846
    %850 = vst.msk [vmem:[%s774] sm:$0xff] %vm221, %v849
    %851 = vst.msk [vmem:[#allocation2] sm:$0xff] %vm236, %v849
    %v852 = vld [vmem:[#allocation3] sm:$0xff]
    %v853 = vld [vmem:[#allocation3 + $0x8] sm:$0xff]
    %v854 = vld [vmem:[#allocation3 + $0x10] sm:$0xff]
    %v855 = vld [vmem:[#allocation3 + $0x18] sm:$0xff]
    %v856 = vld [vmem:[#allocation3 + $0x20] sm:$0xff]
    %v857 = vld [vmem:[#allocation3 + $0x28] sm:$0xff]
    %v858 = vld [vmem:[#allocation3 + $0x30] sm:$0xff]
    %v859 = vld [vmem:[#allocation3 + $0x38] sm:$0xff]
    %v860 = vld [vmem:[%s5] sm:$0xff]
    %v861 = vld [vmem:[%s5 + $0x8] sm:$0xff]
    %v862 = vld [vmem:[%s5 + $0x10] sm:$0xff]
    %v863 = vld [vmem:[%s5 + $0x18] sm:$0xff]
    %v864 = vld [vmem:[%s5 + $0x20] sm:$0xff]
    %v865 = vld [vmem:[%s5 + $0x28] sm:$0xff]
    %v866 = vld [vmem:[%s6] sm:$0x1]
    %v868 = vlaneseq
    %v869 = vshrl.u32 %v868, 7
    %v870 = vsub.s32 0, %v869
    %v871 = vrot.slane %v866, %v870
    %v874 = vsel %vm221, %v852, 0
    %v877 = vsel %vm221, %v853, 0
    %v880 = vsel %vm221, %v854, 0
    %v883 = vsel %vm221, %v855, 0
    %v886 = vsel %vm221, %v856, 0
    %v889 = vsel %vm221, %v857, 0
    %v892 = vsel %vm221, %v858, 0
    %v895 = vsel %vm221, %v859, 0
    %897 = vmatprep.subr.mxu0 0.0
    %898 = vmatpush1.msra.mxu0 %v860
    %899 = vmatprep.subr.mxu0 0.0
    %900 = vmatpush1.msra.mxu0 %v861
    %901 = vmatprep.subr.mxu0 0.0
    %902 = vmatpush1.msra.mxu0 %v862
    %903 = vmatprep.subr.mxu0 0.0
    %904 = vmatpush1.msra.mxu0 %v863
    %905 = vmatprep.subr.mxu0 0.0
    %906 = vmatpush1.msra.mxu0 %v864
    %907 = vmatprep.subr.mxu0 0.0
    %908 = vmatpush1.msra.mxu0 %v865
    %909 = vmatprep.subr.mxu0 0.0
    %910 = vmatpush1.msra.mxu0 0.0
    %911 = vmatprep.subr.mxu0 0.0
    %912 = vmatpush1.msra.mxu0 0.0
    %913 = vmatprep.subr.mxu0 0.0
    %914 = vmatpush1.msra.mxu0 0.0
    %915 = vmatprep.subr.mxu0 0.0
    %916 = vmatpush1.msra.mxu0 0.0
    %917 = vmatprep.subr.mxu0 0.0
    %918 = vmatpush1.msra.mxu0 0.0
    %919 = vmatprep.subr.mxu0 0.0
    %920 = vmatpush1.msra.mxu0 0.0
    %921 = vmatprep.subr.mxu0 0.0
    %922 = vmatpush1.msra.mxu0 0.0
    %923 = vmatprep.subr.mxu0 0.0
    %924 = vmatpush1.msra.mxu0 0.0
    %925 = vmatprep.subr.mxu0 0.0
    %926 = vmatpush1.msra.mxu0 0.0
    %927 = vmatprep.subr.mxu0 0.0
    %928 = vmatpush1.msra.mxu0 0.0
    %929 = vmatprep.subr.mxu0 0.0
    %930 = vmatpush1.msra.mxu0 0.0
    %931 = vmatprep.subr.mxu0 0.0
    %932 = vmatpush1.msra.mxu0 0.0
    %933 = vmatprep.subr.mxu0 0.0
    %934 = vmatpush1.msra.mxu0 0.0
    %935 = vmatprep.subr.mxu0 0.0
    %936 = vmatpush1.msra.mxu0 0.0
    %937 = vmatprep.subr.mxu0 0.0
    %938 = vmatpush1.msra.mxu0 0.0
    %939 = vmatprep.subr.mxu0 0.0
    %940 = vmatpush1.msra.mxu0 0.0
    %941 = vmatprep.subr.mxu0 0.0
    %942 = vmatpush1.msra.mxu0 0.0
    %943 = vmatprep.subr.mxu0 0.0
    %944 = vmatpush1.msra.mxu0 0.0
    %945 = vmatprep.subr.mxu0 0.0
    %946 = vmatpush1.msra.mxu0 0.0
    %947 = vmatprep.subr.mxu0 0.0
    %948 = vmatpush1.msra.mxu0 0.0
    %949 = vmatprep.subr.mxu0 0.0
    %950 = vmatpush1.msra.mxu0 0.0
    %951 = vmatprep.subr.mxu0 0.0
    %952 = vmatpush1.msra.mxu0 0.0
    %953 = vmatprep.subr.mxu0 0.0
    %954 = vmatpush1.msra.mxu0 0.0
    %955 = vmatprep.subr.mxu0 0.0
    %956 = vmatpush1.msra.mxu0 0.0
    %957 = vmatprep.subr.mxu0 0.0
    %958 = vmatpush1.msra.mxu0 0.0
    %959 = vmatprep.subr.mxu0 0.0
    %960 = vmatpush1.msra.mxu0 0.0
    %961 = vmatprep.mubr.f32.mxu0 0.0
    %962 = vmatmul.mubr.f32.gmra.mrb[0].mxu0 %v874
    %v963 = vpop.f32.mrb[0].mxu0
    %v964 = vadd.f32 %v871, %v963
    %v965 = vpop.f32.mrb[0].mxu0
    %966 = vmatprep.mubr.f32.mxu0 0.0
    %967 = vmatmul.mubr.f32.gmra.mrb[0].mxu0 %v877
    %v968 = vpop.f32.mrb[0].mxu0
    %v969 = vadd.f32 %v871, %v968
    %v970 = vpop.f32.mrb[0].mxu0
    %971 = vmatprep.mubr.f32.mxu0 0.0
    %972 = vmatmul.mubr.f32.gmra.mrb[0].mxu0 %v880
    %v973 = vpop.f32.mrb[0].mxu0
    %v974 = vadd.f32 %v871, %v973
    %v975 = vpop.f32.mrb[0].mxu0
    %976 = vmatprep.mubr.f32.mxu0 0.0
    %977 = vmatmul.mubr.f32.gmra.mrb[0].mxu0 %v883
    %v978 = vpop.f32.mrb[0].mxu0
    %v979 = vadd.f32 %v871, %v978
    %v980 = vpop.f32.mrb[0].mxu0
    %981 = vmatprep.mubr.f32.mxu0 0.0
    %982 = vmatmul.mubr.f32.gmra.mrb[0].mxu0 %v886
    %v983 = vpop.f32.mrb[0].mxu0
    %v984 = vadd.f32 %v871, %v983
    %v985 = vpop.f32.mrb[0].mxu0
    %986 = vmatprep.mubr.f32.mxu0 0.0
    %987 = vmatmul.mubr.f32.gmra.mrb[0].mxu0 %v889
    %v988 = vpop.f32.mrb[0].mxu0
    %v989 = vadd.f32 %v871, %v988
    %v990 = vpop.f32.mrb[0].mxu0
    %991 = vmatprep.mubr.f32.mxu0 0.0
    %992 = vmatmul.mubr.f32.gmra.mrb[0].mxu0 %v892
    %v993 = vpop.f32.mrb[0].mxu0
    %v994 = vadd.f32 %v871, %v993
    %v995 = vpop.f32.mrb[0].mxu0
    %996 = vmatprep.mubr.f32.mxu0 0.0
    %997 = vmatmul.mubr.f32.gmra.mrb[0].mxu0 %v895
    %v998 = vpop.f32.mrb[0].mxu0
    %v999 = vadd.f32 %v871, %v998
    %v1000 = vpop.f32.mrb[0].mxu0
    %1001 = vdwg.mxu0
    %vm1002 = vcmask 130048
    %v1003 = vsel %vm1002, %v964, -inf
    %1004 = vmax.xlane.f32.xlu0 %v1003
    %v1005 = vpop.xlane.xlu0 %1004
    %v1006 = vsel %vm1002, %v969, -inf
    %1007 = vmax.xlane.f32.xlu0 %v1006
    %v1008 = vpop.xlane.xlu0 %1007
    %v1009 = vsel %vm1002, %v974, -inf
    %1010 = vmax.xlane.f32.xlu0 %v1009
    %v1011 = vpop.xlane.xlu0 %1010
    %v1012 = vsel %vm1002, %v979, -inf
    %1013 = vmax.xlane.f32.xlu0 %v1012
    %v1014 = vpop.xlane.xlu0 %1013
    %v1015 = vsel %vm1002, %v984, -inf
    %1016 = vmax.xlane.f32.xlu0 %v1015
    %v1017 = vpop.xlane.xlu0 %1016
    %v1018 = vsel %vm1002, %v989, -inf
    %1019 = vmax.xlane.f32.xlu0 %v1018
    %v1020 = vpop.xlane.xlu0 %1019
    %v1021 = vsel %vm1002, %v994, -inf
    %1022 = vmax.xlane.f32.xlu0 %v1021
    %v1023 = vpop.xlane.xlu0 %1022
    %v1024 = vsel %vm1002, %v999, -inf
    %1025 = vmax.xlane.f32.xlu0 %v1024
    %v1026 = vpop.xlane.xlu0 %1025
    %v1027 = vsub.f32 %v964, %v1005
    %v1028 = vsub.f32 %v969, %v1008
    %v1029 = vsub.f32 %v974, %v1011
    %v1030 = vsub.f32 %v979, %v1014
    %v1031 = vsub.f32 %v984, %v1017
    %v1032 = vsub.f32 %v989, %v1020
    %v1033 = vsub.f32 %v994, %v1023
    %v1034 = vsub.f32 %v999, %v1026
    %v1035 = vmul.f32 %v1027, 1.442695
    %v1036 = vpow.pop %v1035
    %v1037 = vmul.f32 %v1028, 1.442695
    %v1038 = vpow.pop %v1037
    %v1039 = vmul.f32 %v1029, 1.442695
    %v1040 = vpow.pop %v1039
    %v1041 = vmul.f32 %v1030, 1.442695
    %v1042 = vpow.pop %v1041
    %v1043 = vmul.f32 %v1031, 1.442695
    %v1044 = vpow.pop %v1043
    %v1045 = vmul.f32 %v1032, 1.442695
    %v1046 = vpow.pop %v1045
    %v1047 = vmul.f32 %v1033, 1.442695
    %v1048 = vpow.pop %v1047
    %v1049 = vmul.f32 %v1034, 1.442695
    %v1050 = vpow.pop %v1049
    %v1051 = vsel %vm1002, %v1036, 0.0
    %1052 = vadd.xlane.f32.xlu0 %v1051
    %v1053 = vpop.xlane.xlu0 %1052
    %v1054 = vsel %vm1002, %v1038, 0.0
    %1055 = vadd.xlane.f32.xlu0 %v1054
    %v1056 = vpop.xlane.xlu0 %1055
    %v1057 = vsel %vm1002, %v1040, 0.0
    %1058 = vadd.xlane.f32.xlu0 %v1057
    %v1059 = vpop.xlane.xlu0 %1058
    %v1060 = vsel %vm1002, %v1042, 0.0
    %1061 = vadd.xlane.f32.xlu0 %v1060
    %v1062 = vpop.xlane.xlu0 %1061
    %v1063 = vsel %vm1002, %v1044, 0.0
    %1064 = vadd.xlane.f32.xlu0 %v1063
    %v1065 = vpop.xlane.xlu0 %1064
    %v1066 = vsel %vm1002, %v1046, 0.0
    %1067 = vadd.xlane.f32.xlu0 %v1066
    %v1068 = vpop.xlane.xlu0 %1067
    %v1069 = vsel %vm1002, %v1048, 0.0
    %1070 = vadd.xlane.f32.xlu0 %v1069
    %v1071 = vpop.xlane.xlu0 %1070
    %v1072 = vsel %vm1002, %v1050, 0.0
    %1073 = vadd.xlane.f32.xlu0 %v1072
    %v1074 = vpop.xlane.xlu0 %1073
    %v1075 = vlog2.pop %v1053
    %v1076 = vmul.f32 %v1075, 0.6931472
    %v1077 = vlog2.pop %v1056
    %v1078 = vmul.f32 %v1077, 0.6931472
    %v1079 = vlog2.pop %v1059
    %v1080 = vmul.f32 %v1079, 0.6931472
    %v1081 = vlog2.pop %v1062
    %v1082 = vmul.f32 %v1081, 0.6931472
    %v1083 = vlog2.pop %v1065
    %v1084 = vmul.f32 %v1083, 0.6931472
    %v1085 = vlog2.pop %v1068
    %v1086 = vmul.f32 %v1085, 0.6931472
    %v1087 = vlog2.pop %v1071
    %v1088 = vmul.f32 %v1087, 0.6931472
    %v1089 = vlog2.pop %v1074
    %v1090 = vmul.f32 %v1089, 0.6931472
    %v1091 = vadd.f32 %v1005, %v1076
    %v1092 = vadd.f32 %v1008, %v1078
    %v1093 = vadd.f32 %v1011, %v1080
    %v1094 = vadd.f32 %v1014, %v1082
    %v1095 = vadd.f32 %v1017, %v1084
    %v1096 = vadd.f32 %v1020, %v1086
    %v1097 = vadd.f32 %v1023, %v1088
    %v1098 = vadd.f32 %v1026, %v1090
    %v1099 = vsub.f32 %v964, %v1091
    %v1100 = vsub.f32 %v969, %v1092
    %v1101 = vsub.f32 %v974, %v1093
    %v1102 = vsub.f32 %v979, %v1094
    %v1103 = vsub.f32 %v984, %v1095
    %v1104 = vsub.f32 %v989, %v1096
    %v1105 = vsub.f32 %v994, %v1097
    %v1106 = vsub.f32 %v999, %v1098
    %1107 = vrot.lane.b32.xlu0 %v852, 16
    %v1108 = vpop.permute.xlu0 %1107
    %1109 = vrot.lane.b32.xlu0 %v853, 16
    %v1110 = vpop.permute.xlu0 %1109
    %1111 = vrot.lane.b32.xlu0 %v854, 16
    %v1112 = vpop.permute.xlu0 %1111
    %1113 = vrot.lane.b32.xlu0 %v855, 16
    %v1114 = vpop.permute.xlu0 %1113
    %1115 = vrot.lane.b32.xlu0 %v856, 16
    %v1116 = vpop.permute.xlu0 %1115
    %1117 = vrot.lane.b32.xlu0 %v857, 16
    %v1118 = vpop.permute.xlu0 %1117
    %1119 = vrot.lane.b32.xlu0 %v858, 16
    %v1120 = vpop.permute.xlu0 %1119
    %1121 = vrot.lane.b32.xlu0 %v859, 16
    %v1122 = vpop.permute.xlu0 %1121
    %v1131 = vsel %vm1002, %v1099, %v1108
    %v1132 = vsel %vm1002, %v1100, %v1110
    %v1133 = vsel %vm1002, %v1101, %v1112
    %v1134 = vsel %vm1002, %v1102, %v1114
    %v1135 = vsel %vm1002, %v1103, %v1116
    %v1136 = vsel %vm1002, %v1104, %v1118
    %v1137 = vsel %vm1002, %v1105, %v1120
    %v1138 = vsel %vm1002, %v1106, %v1122
    %v1139 = vsel %vm221, %v1131, 0.0
    %v1140 = vsel %vm221, %v1132, 0.0
    %v1141 = vsel %vm221, %v1133, 0.0
    %v1142 = vsel %vm221, %v1134, 0.0
    %v1143 = vsel %vm221, %v1135, 0.0
    %v1144 = vsel %vm221, %v1136, 0.0
    %v1145 = vsel %vm221, %v1137, 0.0
    %v1146 = vsel %vm221, %v1138, 0.0
    %1147 = vst [vmem:[#allocation10] sm:$0xff] %v1139
    %1148 = vst [vmem:[#allocation10 + $0x8] sm:$0xff] %v1140
    %1149 = vst [vmem:[#allocation10 + $0x10] sm:$0xff] %v1141
    %1150 = vst [vmem:[#allocation10 + $0x18] sm:$0xff] %v1142
    %1151 = vst [vmem:[#allocation10 + $0x20] sm:$0xff] %v1143
    %1152 = vst [vmem:[#allocation10 + $0x28] sm:$0xff] %v1144
    %1153 = vst [vmem:[#allocation10 + $0x30] sm:$0xff] %v1145
    %1154 = vst [vmem:[#allocation10 + $0x38] sm:$0xff] %v1146
    // Predicated region
    $region46: #{tpu_custom_call.1} parent=1 // pred_check
      _
    $region47: #{tpu_custom_call.1} parent=1 // pred_check_branch
      %1156 = sbr.rel (0) target = $region49
    $region48: #{tpu_custom_call.1} parent=1 // pred_region
      %s1158 = ssub.s32 1024, 1024
      %1159 = vsyncadd [#allocation6], %s1158
      %s1160 = sshll.u32 [#allocation10], 4
      %s1161 = int_to_ptr.vmem [resolvable:$true] %s1160
      %1166 = dma.vmem_to_hbm [thread:$0]  %s1161, 1024, %s7, [#allocation6], 128, 128, 8
    $region49: #{tpu_custom_call.1} parent=1 // pred_fallthru
      _
    // Predicated region
    $region50: #{tpu_custom_call.1} parent=1 // pred_check
      _
    $region51: #{tpu_custom_call.1} parent=1 // pred_check_branch
      %1168 = sbr.rel (0) target = $region53
    $region52: #{tpu_custom_call.1} parent=1 // pred_region
      %1169 = dma.done [#allocation6], 1024
    $region53: #{tpu_custom_call.1} parent=1 // pred_fallthru
      _
    %1170 = vsyncpa [#allocation5], 1
    %1171 = vsyncpa [#allocation8], 1
    %1172 = vsyncpa [#allocation6], 1

</llo_original>
